<compile_context>
chip_gen: v5e
topology: v5e:2x2
jax: 0.10.0
libtpu: 0.0.40
codegen_flags: <defaults>
</compile_context>

<pallas_src>
import functools

import jax
import jax.numpy as jnp
from jax import lax
from jax.experimental import pallas as pl
from jax.experimental.pallas import tpu as pltpu


def _round_up(x, m):
    return (x + m - 1) // m * m


def _pick_tile_h(hout, wp, wout, cin_p, cout_p, stride, dilation,
                 budget_bytes=12 * 1024 * 1024):
    """Largest H tile whose (double-buffered) blocks + intermediates fit the VMEM budget."""
    th = 1
    for cand in range(1, min(hout, 256) + 1):
        halo = cand * stride + 2 * dilation
        in_b = halo * wp * cin_p * 4                  # f32 input halo tile
        mid_b = cand * wout * cin_p * 6               # f32 acc + bf16 y intermediate
        out_b = cand * wout * cout_p * 4              # f32 output slab
        if 2 * (in_b + out_b) + in_b + mid_b <= budget_bytes:
            th = cand
        else:
            break
    return th


def _dw_pw_kernel(x_ref, wdw_ref, bdw_ref, wpw_ref, bpw_ref, o_ref,
                  *, th, wout, stride, dilation, resident):
    """One (batch, H-tile) slab per grid step.

    x_ref   : (1, HB, Wp, Cin_p) f32
              resident path: HB = full padded image height (block index constant across the
              H-tile axis -> DMA'd once per batch and reused);  tiled path: HB = halo_h.
    wdw_ref : (3, 3, Cin_p)              f32   depthwise weights, BN1 scale folded in
    bdw_ref : (1, Cin_p)                 f32   BN1 bias
    wpw_ref : (Cin_p, Cout_p)            bf16  pointwise weights, BN2 scale folded in
    bpw_ref : (1, Cout_p)                f32   BN2 bias
    o_ref   : (1, 1, TH*Wout, Cout_p)    f32   lane-dense output slab
    """
    wdw = wdw_ref[...]                                # (3, 3, Cin_p)
    _, _, wp, cin_p = x_ref.shape
    xv = x_ref.at[0]                                  # (HB, Wp, Cin_p) ref view (no load)

    if resident:
        r0 = pl.multiple_of(pl.program_id(1) * (th * stride), th * stride)
    else:
        r0 = 0                                        # halo tile already starts at this row

    # --- depthwise 3x3 conv: 9 shifted multiply-adds on the VPU (f32) ---
    acc = jnp.zeros((th, wout, cin_p), jnp.float32)
    for kh in range(3):
        rows = xv[pl.ds(r0 + kh * dilation, th * stride)]        # (th*stride, Wp, Cin_p)
        if stride > 1:                                # decimate H via reshape (no strided ld)
            rows = rows.reshape(th, stride, wp, cin_p)[:, 0]
        for kw in range(3):
            w0 = kw * dilation
            cols = lax.slice(rows, (0, w0, 0), (th, w0 + wout * stride, cin_p))
            if stride > 1:                            # decimate W via reshape (no strided ld)
                cols = cols.reshape(th, wout, stride, cin_p)[:, :, 0, :]
            acc = acc + cols * wdw[kh, kw, :]

    # BN1 bias + ReLU (f32)
    y = jnp.maximum(acc + bdw_ref[0], 0.0)            # (th, wout, cin_p)

    # --- pointwise 1x1 conv == lane-dense 2-D GEMM on the MXU (bf16 in, f32 accumulate) ---
    y2 = y.reshape(th * wout, cin_p).astype(jnp.bfloat16)
    z = jnp.dot(y2, wpw_ref[...], preferred_element_type=jnp.float32)    # (M, Cout_p)

    # BN2 bias + ReLU, lane-dense store
    o_ref[0, 0] = jnp.maximum(z + bpw_ref[0], 0.0).astype(o_ref.dtype)


def dwconv_bn_relu(x_nchw, params, *, stride=1, padding=0, dilation=1,
                   tile_h=None, max_resident_bytes=40 * 1024 * 1024):
    """Forward pass of DWConvBNReLU (inference-mode BN). Input/output are NCHW float32."""
    eps = 1e-5
    w_dw = params["w_dw"]            # (Cin, 1, 3, 3)  PyTorch depthwise layout
    w_pw = params["w_pw"]            # (Cout, Cin, 1, 1)
    g1, b1, m1, v1 = params["bn1"]   # each (Cin,)
    g2, b2, m2, v2 = params["bn2"]   # each (Cout,)

    n, cin, h_in, w_in = x_nchw.shape
    cout = w_pw.shape[0]

    # Fold BN (eval mode) into per-channel scale/bias, then scale into the conv weights.
    s1 = g1 / jnp.sqrt(v1 + eps)
    bias1 = b1 - m1 * s1
    s2 = g2 / jnp.sqrt(v2 + eps)
    bias2 = b2 - m2 * s2

    cin_p = _round_up(cin, 128)
    cout_p = _round_up(cout, 128)

    wdw = jnp.transpose(w_dw[:, 0, :, :], (1, 2, 0)) * s1[None, None, :]     # (3,3,Cin)
    wdw = jnp.pad(wdw, ((0, 0), (0, 0), (0, cin_p - cin))).astype(jnp.float32)
    b1p = jnp.pad(bias1, (0, cin_p - cin)).reshape(1, cin_p).astype(jnp.float32)
    wpw = jnp.transpose(w_pw[:, :, 0, 0], (1, 0)) * s2[None, :]              # (Cin,Cout)
    wpw = jnp.pad(wpw, ((0, cin_p - cin), (0, cout_p - cout))).astype(jnp.bfloat16)
    b2p = jnp.pad(bias2, (0, cout_p - cout)).reshape(1, cout_p).astype(jnp.float32)

    # Output spatial size (3x3 depthwise conv).
    hout = (h_in + 2 * padding - dilation * 2 - 1) // stride + 1
    wout = (w_in + 2 * padding - dilation * 2 - 1) // stride + 1
    assert hout >= 1 and wout >= 1, (hout, wout)

    wp_need = wout * stride + 2 * dilation
    wp_est = max(wp_need, w_in + 2 * padding)

    if tile_h is None:
        th = _pick_tile_h(hout, wp_est, wout, cin_p, cout_p, stride, dilation)
    else:
        th = max(1, min(tile_h, hout))

    n_tiles = -(-hout // th)
    hout_pad = n_tiles * th
    halo_h = th * stride + 2 * dilation
    hp_need = hout_pad * stride + 2 * dilation

    pad_h_bot = padding + max(0, hp_need - (h_in + 2 * padding))
    pad_w_right = padding + max(0, wp_need - (w_in + 2 * padding))

    # NCHW -> NHWC, channel pad to Cin_p, spatial zero-pad — one rearrangement pass.
    x = jnp.transpose(x_nchw, (0, 2, 3, 1)).astype(jnp.float32)
    x = jnp.pad(x, ((0, 0), (padding, pad_h_bot), (padding, pad_w_right), (0, cin_p - cin)))
    hp, wp = x.shape[1], x.shape[2]

    m = th * wout

    # Per-step VMEM estimate with the whole padded image kept resident (double-buffered
    # blocks + in-kernel intermediates + per-kh loaded row windows).  If it fits we skip the
    # halo-tile gather: the input block index is constant along the H-tile grid axis, so
    # Pallas DMAs each batch's image once and every tile slices its halo with pl.ds.
    weights_b = (int(wdw.size) * 4 + int(b1p.size) * 4
                 + int(wpw.size) * 2 + int(b2p.size) * 4)
    resident_b = (2 * (hp * wp * cin_p * 4 + weights_b + m * cout_p * 4)
                  + m * cin_p * 6 + m * cout_p * 4 + halo_h * wp * cin_p * 4)
    resident = resident_b <= max_resident_bytes

    kernel = functools.partial(_dw_pw_kernel, th=th, wout=wout,
                               stride=stride, dilation=dilation, resident=resident)

    if resident:
        x_in = x                                              # (N, Hp, Wp, Cin_p)
        x_spec = pl.BlockSpec((1, hp, wp, cin_p), lambda b, t: (b, 0, 0, 0))
    else:
        # Fallback for very large images: gather halo H-tiles in HBM
        # (duplicates only the 2*dilation overlap rows per tile).
        row_idx = (jnp.arange(n_tiles) * (th * stride))[:, None] + jnp.arange(halo_h)[None, :]
        x_in = x[:, row_idx].reshape(n * n_tiles, halo_h, wp, cin_p)
        x_spec = pl.BlockSpec((1, halo_h, wp, cin_p),
                              lambda b, t: (b * n_tiles + t, 0, 0, 0))

    flops = 2 * n * hout_pad * wout * cin_p * (9 + cout_p)
    bytes_accessed = (int(x_in.size) * 4 + weights_b + n * n_tiles * m * cout_p * 4)

    out = pl.pallas_call(
        kernel,
        out_shape=jax.ShapeDtypeStruct((n, n_tiles, m, cout_p), jnp.float32),
        grid_spec=pltpu.PrefetchScalarGridSpec(
            num_scalar_prefetch=0,
            grid=(n, n_tiles),
            in_specs=[
                x_spec,
                pl.BlockSpec((3, 3, cin_p), lambda b, t: (0, 0, 0)),
                pl.BlockSpec((1, cin_p), lambda b, t: (0, 0)),
                pl.BlockSpec((cin_p, cout_p), lambda b, t: (0, 0)),
                pl.BlockSpec((1, cout_p), lambda b, t: (0, 0)),
            ],
            out_specs=pl.BlockSpec((1, 1, m, cout_p), lambda b, t: (b, t, 0, 0)),
        ),
        compiler_params=pltpu.CompilerParams(
            dimension_semantics=("parallel", "parallel"),
            vmem_limit_bytes=48 * 1024 * 1024,
        ),
        cost_estimate=pl.CostEstimate(flops=flops, transcendentals=0,
                                      bytes_accessed=bytes_accessed),
    )(x_in, wdw, b1p, wpw, b2p)

    # (N, n_tiles, TH*Wout, Cout_p) -> (N, Hout, Wout, Cout) -> NCHW.
    out = out.reshape(n, hout_pad, wout, cout_p)[:, :hout, :, :cout]
    return jnp.transpose(out, (0, 3, 1, 2))


def _reference(x_nchw, params, *, stride=1, padding=0, dilation=1):
    """Pure-JAX reference mirroring the PyTorch module (BN in eval mode)."""
    eps = 1e-5
    w_dw = params["w_dw"]
    w_pw = params["w_pw"]
    g1, b1, m1, v1 = params["bn1"]
    g2, b2, m2, v2 = params["bn2"]
    cin = x_nchw.shape[1]

    y = lax.conv_general_dilated(
        x_nchw, w_dw, window_strides=(stride, stride),
        padding=((padding, padding), (padding, padding)),
        rhs_dilation=(dilation, dilation),
        dimension_numbers=("NCHW", "OIHW", "NCHW"),
        feature_group_count=cin,
    )
    y = (y - m1[None, :, None, None]) / jnp.sqrt(v1 + eps)[None, :, None, None]
    y = y * g1[None, :, None, None] + b1[None, :, None, None]
    y = jnp.maximum(y, 0.0)

    z = lax.conv_general_dilated(
        y, w_pw, window_strides=(1, 1), padding="VALID",
        dimension_numbers=("NCHW", "OIHW", "NCHW"),
    )
    z = (z - m2[None, :, None, None]) / jnp.sqrt(v2 + eps)[None, :, None, None]
    z = z * g2[None, :, None, None] + b2[None, :, None, None]
    return jnp.maximum(z, 0.0)


def _init_params(key, in_channels, out_channels):
    k = jax.random.split(key, 8)
    return {
        "w_dw": 0.3 * jax.random.normal(k[0], (in_channels, 1, 3, 3), jnp.float32),
        "w_pw": 0.3 * jax.random.normal(k[1], (out_channels, in_channels, 1, 1), jnp.float32),
        "bn1": (
            1.0 + 0.1 * jax.random.normal(k[2], (in_channels,), jnp.float32),   # gamma
            0.1 * jax.random.normal(k[3], (in_channels,), jnp.float32),         # beta
            0.1 * jax.random.normal(k[4], (in_channels,), jnp.float32),         # running_mean
            1.0 + 0.1 * jnp.abs(jax.random.normal(k[5], (in_channels,), jnp.float32)),  # var
        ),
        "bn2": (
            1.0 + 0.1 * jax.random.normal(k[6], (out_channels,), jnp.float32),
            0.1 * jax.random.normal(k[7], (out_channels,), jnp.float32),
            jnp.zeros((out_channels,), jnp.float32),
            jnp.ones((out_channels,), jnp.float32),
        ),
    }


if __name__ == "__main__":
    key = jax.random.PRNGKey(0)
    k_x, k_p = jax.random.split(key)

    in_channels, out_channels = 4, 8
    n, h, w = 2, 16, 16
    x = jax.random.normal(k_x, (n, in_channels, h, w), jnp.float32)   # NCHW like PyTorch
    params = _init_params(k_p, in_channels, out_channels)

    # bf16-fed MXU: compare against the f32 reference with a bf16-appropriate tolerance.
    configs = [
        dict(stride=1, padding=0, dilation=1),                           # resident image path
        dict(stride=2, padding=1, dilation=1),                           # resident, strided
        dict(stride=1, padding=2, dilation=2),                           # resident, dilated
        dict(stride=2, padding=1, dilation=1, tile_h=3,
             max_resident_bytes=0),                                      # halo-tiled fallback
    ]
    for cfg in configs:
        out = dwconv_bn_relu(x, params, **cfg)
        out = jax.block_until_ready(out)
        ref = _reference(x, params, stride=cfg["stride"], padding=cfg["padding"],
                         dilation=cfg["dilation"])
        assert out.shape == ref.shape, (cfg, out.shape, ref.shape)
        err = float(jnp.max(jnp.abs(out - ref)))
        assert jnp.allclose(out, ref, atol=5e-2, rtol=5e-2), (cfg, err)

    print("KERNEL_OK")
</pallas_src>

<mosaic_0001>
module attributes {stable_mosaic.version = 11 : i64} {
  func.func @_dw_pw_kernel(%arg0: i32, %arg1: i32, %arg2: memref<1x16x16x128xf32, #tpu.memory_space<vmem>>, %arg3: memref<3x3x128xf32, #tpu.memory_space<vmem>>, %arg4: memref<1x128xf32, #tpu.memory_space<vmem>>, %arg5: memref<128x128xbf16, #tpu.memory_space<vmem>>, %arg6: memref<1x128xf32, #tpu.memory_space<vmem>>, %arg7: memref<1x1x196x128xf32, #tpu.memory_space<vmem>>) attributes {dimension_semantics = [#tpu.dimension_semantics<parallel>, #tpu.dimension_semantics<parallel>], iteration_bounds = array<i64: 2, 1>, scalar_prefetch = 0 : i64, scratch_operands = 0 : i64, tpu.core_type = #tpu.core_type<tc>, window_params = [{transform_indices = @transform_0, window_bounds = array<i64: 1, 16, 16, 128>}, {pipeline_mode = #tpu.pipeline_mode<synchronous>, transform_indices = @transform_1, window_bounds = array<i64: 3, 3, 128>}, {pipeline_mode = #tpu.pipeline_mode<synchronous>, transform_indices = @transform_2, window_bounds = array<i64: 1, 128>}, {pipeline_mode = #tpu.pipeline_mode<synchronous>, transform_indices = @transform_3, window_bounds = array<i64: 128, 128>}, {pipeline_mode = #tpu.pipeline_mode<synchronous>, transform_indices = @transform_4, window_bounds = array<i64: 1, 128>}, {transform_indices = @transform_5, window_bounds = array<i64: 1, 1, 196, 128>}]} {
    %c0 = arith.constant 0 : index
    %c0_0 = arith.constant 0 : index
    %c0_1 = arith.constant 0 : index
    %0 = vector.load %arg3[%c0, %c0_0, %c0_1] : memref<3x3x128xf32, #tpu.memory_space<vmem>>, vector<3x3x128xf32>
    %c14_i32 = arith.constant 14 : i32
    %1 = arith.muli %arg1, %c14_i32 : i32
    %2 = tpu.assume_multiple %1, 14 : i32
    %cst = arith.constant 0.000000e+00 : f32
    %3 = vector.broadcast %cst : f32 to vector<14x14x128xf32>
    %c0_i32 = arith.constant 0 : i32
    %4 = arith.addi %2, %c0_i32 : i32
    %c0_i32_2 = arith.constant 0 : i32
    %c0_i32_3 = arith.constant 0 : i32
    %c0_i32_4 = arith.constant 0 : i32
    %c0_i32_5 = arith.constant 0 : i32
    %5 = tpu.memref_slice %arg2[%c0_i32_2, %c0_i32_3, %c0_i32_4, %c0_i32_5] : memref<1x16x16x128xf32, #tpu.memory_space<vmem>> -> memref<1x16x16x128xf32, #tpu.memory_space<vmem>>
    %6 = tpu.memref_squeeze %5 : memref<1x16x16x128xf32, #tpu.memory_space<vmem>> -> memref<16x16x128xf32, #tpu.memory_space<vmem>>
    %7 = arith.index_cast %4 : i32 to index
    %c0_6 = arith.constant 0 : index
    %c0_7 = arith.constant 0 : index
    %8 = vector.load %6[%7, %c0_6, %c0_7] : memref<16x16x128xf32, #tpu.memory_space<vmem>>, vector<14x16x128xf32>
    %9 = vector.extract_strided_slice %8 {offsets = [0, 0, 0], sizes = [14, 14, 128], strides = [1, 1, 1]} : vector<14x16x128xf32> to vector<14x14x128xf32>
    %10 = vector.extract_strided_slice %0 {offsets = [0, 0, 0], sizes = [1, 1, 128], strides = [1, 1, 1]} : vector<3x3x128xf32> to vector<1x1x128xf32>
    %11 = vector.shape_cast %10 : vector<1x1x128xf32> to vector<128xf32>
    %12 = vector.shape_cast %11 : vector<128xf32> to vector<1x1x128xf32>
    %13 = vector.broadcast %12 : vector<1x1x128xf32> to vector<14x14x128xf32>
    %14 = arith.mulf %9, %13 : vector<14x14x128xf32>
    %15 = arith.addf %3, %14 : vector<14x14x128xf32>
    %16 = vector.extract_strided_slice %8 {offsets = [0, 1, 0], sizes = [14, 14, 128], strides = [1, 1, 1]} : vector<14x16x128xf32> to vector<14x14x128xf32>
    %17 = vector.extract_strided_slice %0 {offsets = [0, 1, 0], sizes = [1, 1, 128], strides = [1, 1, 1]} : vector<3x3x128xf32> to vector<1x1x128xf32>
    %18 = vector.shape_cast %17 : vector<1x1x128xf32> to vector<128xf32>
    %19 = vector.shape_cast %18 : vector<128xf32> to vector<1x1x128xf32>
    %20 = vector.broadcast %19 : vector<1x1x128xf32> to vector<14x14x128xf32>
    %21 = arith.mulf %16, %20 : vector<14x14x128xf32>
    %22 = arith.addf %15, %21 : vector<14x14x128xf32>
    %23 = vector.extract_strided_slice %8 {offsets = [0, 2, 0], sizes = [14, 14, 128], strides = [1, 1, 1]} : vector<14x16x128xf32> to vector<14x14x128xf32>
    %24 = vector.extract_strided_slice %0 {offsets = [0, 2, 0], sizes = [1, 1, 128], strides = [1, 1, 1]} : vector<3x3x128xf32> to vector<1x1x128xf32>
    %25 = vector.shape_cast %24 : vector<1x1x128xf32> to vector<128xf32>
    %26 = vector.shape_cast %25 : vector<128xf32> to vector<1x1x128xf32>
    %27 = vector.broadcast %26 : vector<1x1x128xf32> to vector<14x14x128xf32>
    %28 = arith.mulf %23, %27 : vector<14x14x128xf32>
    %29 = arith.addf %22, %28 : vector<14x14x128xf32>
    %c1_i32 = arith.constant 1 : i32
    %30 = arith.addi %2, %c1_i32 : i32
    %c0_i32_8 = arith.constant 0 : i32
    %c0_i32_9 = arith.constant 0 : i32
    %c0_i32_10 = arith.constant 0 : i32
    %c0_i32_11 = arith.constant 0 : i32
    %31 = tpu.memref_slice %arg2[%c0_i32_8, %c0_i32_9, %c0_i32_10, %c0_i32_11] : memref<1x16x16x128xf32, #tpu.memory_space<vmem>> -> memref<1x16x16x128xf32, #tpu.memory_space<vmem>>
    %32 = tpu.memref_squeeze %31 : memref<1x16x16x128xf32, #tpu.memory_space<vmem>> -> memref<16x16x128xf32, #tpu.memory_space<vmem>>
    %33 = arith.index_cast %30 : i32 to index
    %c0_12 = arith.constant 0 : index
    %c0_13 = arith.constant 0 : index
    %34 = vector.load %32[%33, %c0_12, %c0_13] : memref<16x16x128xf32, #tpu.memory_space<vmem>>, vector<14x16x128xf32>
    %35 = vector.extract_strided_slice %34 {offsets = [0, 0, 0], sizes = [14, 14, 128], strides = [1, 1, 1]} : vector<14x16x128xf32> to vector<14x14x128xf32>
    %36 = vector.extract_strided_slice %0 {offsets = [1, 0, 0], sizes = [1, 1, 128], strides = [1, 1, 1]} : vector<3x3x128xf32> to vector<1x1x128xf32>
    %37 = vector.shape_cast %36 : vector<1x1x128xf32> to vector<128xf32>
    %38 = vector.shape_cast %37 : vector<128xf32> to vector<1x1x128xf32>
    %39 = vector.broadcast %38 : vector<1x1x128xf32> to vector<14x14x128xf32>
    %40 = arith.mulf %35, %39 : vector<14x14x128xf32>
    %41 = arith.addf %29, %40 : vector<14x14x128xf32>
    %42 = vector.extract_strided_slice %34 {offsets = [0, 1, 0], sizes = [14, 14, 128], strides = [1, 1, 1]} : vector<14x16x128xf32> to vector<14x14x128xf32>
    %43 = vector.extract_strided_slice %0 {offsets = [1, 1, 0], sizes = [1, 1, 128], strides = [1, 1, 1]} : vector<3x3x128xf32> to vector<1x1x128xf32>
    %44 = vector.shape_cast %43 : vector<1x1x128xf32> to vector<128xf32>
    %45 = vector.shape_cast %44 : vector<128xf32> to vector<1x1x128xf32>
    %46 = vector.broadcast %45 : vector<1x1x128xf32> to vector<14x14x128xf32>
    %47 = arith.mulf %42, %46 : vector<14x14x128xf32>
    %48 = arith.addf %41, %47 : vector<14x14x128xf32>
    %49 = vector.extract_strided_slice %34 {offsets = [0, 2, 0], sizes = [14, 14, 128], strides = [1, 1, 1]} : vector<14x16x128xf32> to vector<14x14x128xf32>
    %50 = vector.extract_strided_slice %0 {offsets = [1, 2, 0], sizes = [1, 1, 128], strides = [1, 1, 1]} : vector<3x3x128xf32> to vector<1x1x128xf32>
    %51 = vector.shape_cast %50 : vector<1x1x128xf32> to vector<128xf32>
    %52 = vector.shape_cast %51 : vector<128xf32> to vector<1x1x128xf32>
    %53 = vector.broadcast %52 : vector<1x1x128xf32> to vector<14x14x128xf32>
    %54 = arith.mulf %49, %53 : vector<14x14x128xf32>
    %55 = arith.addf %48, %54 : vector<14x14x128xf32>
    %c2_i32 = arith.constant 2 : i32
    %56 = arith.addi %2, %c2_i32 : i32
    %c0_i32_14 = arith.constant 0 : i32
    %c0_i32_15 = arith.constant 0 : i32
    %c0_i32_16 = arith.constant 0 : i32
    %c0_i32_17 = arith.constant 0 : i32
    %57 = tpu.memref_slice %arg2[%c0_i32_14, %c0_i32_15, %c0_i32_16, %c0_i32_17] : memref<1x16x16x128xf32, #tpu.memory_space<vmem>> -> memref<1x16x16x128xf32, #tpu.memory_space<vmem>>
    %58 = tpu.memref_squeeze %57 : memref<1x16x16x128xf32, #tpu.memory_space<vmem>> -> memref<16x16x128xf32, #tpu.memory_space<vmem>>
    %59 = arith.index_cast %56 : i32 to index
    %c0_18 = arith.constant 0 : index
    %c0_19 = arith.constant 0 : index
    %60 = vector.load %58[%59, %c0_18, %c0_19] : memref<16x16x128xf32, #tpu.memory_space<vmem>>, vector<14x16x128xf32>
    %61 = vector.extract_strided_slice %60 {offsets = [0, 0, 0], sizes = [14, 14, 128], strides = [1, 1, 1]} : vector<14x16x128xf32> to vector<14x14x128xf32>
    %62 = vector.extract_strided_slice %0 {offsets = [2, 0, 0], sizes = [1, 1, 128], strides = [1, 1, 1]} : vector<3x3x128xf32> to vector<1x1x128xf32>
    %63 = vector.shape_cast %62 : vector<1x1x128xf32> to vector<128xf32>
    %64 = vector.shape_cast %63 : vector<128xf32> to vector<1x1x128xf32>
    %65 = vector.broadcast %64 : vector<1x1x128xf32> to vector<14x14x128xf32>
    %66 = arith.mulf %61, %65 : vector<14x14x128xf32>
    %67 = arith.addf %55, %66 : vector<14x14x128xf32>
    %68 = vector.extract_strided_slice %60 {offsets = [0, 1, 0], sizes = [14, 14, 128], strides = [1, 1, 1]} : vector<14x16x128xf32> to vector<14x14x128xf32>
    %69 = vector.extract_strided_slice %0 {offsets = [2, 1, 0], sizes = [1, 1, 128], strides = [1, 1, 1]} : vector<3x3x128xf32> to vector<1x1x128xf32>
    %70 = vector.shape_cast %69 : vector<1x1x128xf32> to vector<128xf32>
    %71 = vector.shape_cast %70 : vector<128xf32> to vector<1x1x128xf32>
    %72 = vector.broadcast %71 : vector<1x1x128xf32> to vector<14x14x128xf32>
    %73 = arith.mulf %68, %72 : vector<14x14x128xf32>
    %74 = arith.addf %67, %73 : vector<14x14x128xf32>
    %75 = vector.extract_strided_slice %60 {offsets = [0, 2, 0], sizes = [14, 14, 128], strides = [1, 1, 1]} : vector<14x16x128xf32> to vector<14x14x128xf32>
    %76 = vector.extract_strided_slice %0 {offsets = [2, 2, 0], sizes = [1, 1, 128], strides = [1, 1, 1]} : vector<3x3x128xf32> to vector<1x1x128xf32>
    %77 = vector.shape_cast %76 : vector<1x1x128xf32> to vector<128xf32>
    %78 = vector.shape_cast %77 : vector<128xf32> to vector<1x1x128xf32>
    %79 = vector.broadcast %78 : vector<1x1x128xf32> to vector<14x14x128xf32>
    %80 = arith.mulf %75, %79 : vector<14x14x128xf32>
    %81 = arith.addf %74, %80 : vector<14x14x128xf32>
    %c0_20 = arith.constant 0 : index
    %c0_21 = arith.constant 0 : index
    %82 = vector.load %arg4[%c0_20, %c0_21] : memref<1x128xf32, #tpu.memory_space<vmem>>, vector<1x128xf32>
    %83 = vector.shape_cast %82 : vector<1x128xf32> to vector<128xf32>
    %84 = vector.shape_cast %83 : vector<128xf32> to vector<1x1x128xf32>
    %85 = vector.broadcast %84 : vector<1x1x128xf32> to vector<14x14x128xf32>
    %86 = arith.addf %81, %85 : vector<14x14x128xf32>
    %cst_22 = arith.constant 0.000000e+00 : f32
    %87 = vector.broadcast %cst_22 : f32 to vector<14x14x128xf32>
    %88 = arith.maximumf %86, %87 : vector<14x14x128xf32>
    %89 = vector.shape_cast %88 : vector<14x14x128xf32> to vector<196x128xf32>
    %90 = arith.truncf %89 : vector<196x128xf32> to vector<196x128xbf16>
    %c0_23 = arith.constant 0 : index
    %c0_24 = arith.constant 0 : index
    %91 = vector.load %arg5[%c0_23, %c0_24] : memref<128x128xbf16, #tpu.memory_space<vmem>>, vector<128x128xbf16>
    %cst_25 = arith.constant dense<0.000000e+00> : vector<196x128xf32>
    %92 = tpu.matmul %90, %91, %cst_25 {dimension_numbers = #tpu.dot_dimension_numbers<[1], [0], [0], [1], [0, 0, 1, 1], [], []>} : vector<196x128xbf16>, vector<128x128xbf16>, vector<196x128xf32> -> vector<196x128xf32>
    %c0_26 = arith.constant 0 : index
    %c0_27 = arith.constant 0 : index
    %93 = vector.load %arg6[%c0_26, %c0_27] : memref<1x128xf32, #tpu.memory_space<vmem>>, vector<1x128xf32>
    %94 = vector.shape_cast %93 : vector<1x128xf32> to vector<128xf32>
    %95 = vector.shape_cast %94 : vector<128xf32> to vector<1x128xf32>
    %96 = vector.broadcast %95 : vector<1x128xf32> to vector<196x128xf32>
    %97 = arith.addf %92, %96 : vector<196x128xf32>
    %cst_28 = arith.constant 0.000000e+00 : f32
    %98 = vector.broadcast %cst_28 : f32 to vector<196x128xf32>
    %99 = arith.maximumf %97, %98 : vector<196x128xf32>
    %c0_29 = arith.constant 0 : index
    %c0_30 = arith.constant 0 : index
    %c0_31 = arith.constant 0 : index
    %c0_32 = arith.constant 0 : index
    %100 = vector.load %arg7[%c0_29, %c0_30, %c0_31, %c0_32] : memref<1x1x196x128xf32, #tpu.memory_space<vmem>>, vector<1x1x196x128xf32>
    %101 = vector.shape_cast %100 : vector<1x1x196x128xf32> to vector<196x128xf32>
    %102 = vector.shape_cast %99 : vector<196x128xf32> to vector<1x1x196x128xf32>
    tpu.vector_store %arg7[%c0_29, %c0_30, %c0_31, %c0_32], %102 {strides = array<i32>} : memref<1x1x196x128xf32, #tpu.memory_space<vmem>>, vector<1x1x196x128xf32>,
    return
  }
  func.func @transform_0(%arg0: i32, %arg1: i32) -> (i32, i32, i32, i32) {
    %c0_i32 = arith.constant 0 : i32
    %c0_i32_0 = arith.constant 0 : i32
    %c0_i32_1 = arith.constant 0 : i32
    %c0_i32_2 = arith.constant 0 : i32
    return %arg0, %c0_i32, %c0_i32_0, %c0_i32_1 : i32, i32, i32, i32
  }
  func.func @transform_1(%arg0: i32, %arg1: i32) -> (i32, i32, i32) {
    %c0_i32 = arith.constant 0 : i32
    %c0_i32_0 = arith.constant 0 : i32
    %c0_i32_1 = arith.constant 0 : i32
    %c0_i32_2 = arith.constant 0 : i32
    return %c0_i32, %c0_i32_0, %c0_i32_1 : i32, i32, i32
  }
  func.func @transform_2(%arg0: i32, %arg1: i32) -> (i32, i32) {
    %c0_i32 = arith.constant 0 : i32
    %c0_i32_0 = arith.constant 0 : i32
    %c0_i32_1 = arith.constant 0 : i32
    return %c0_i32, %c0_i32_0 : i32, i32
  }
  func.func @transform_3(%arg0: i32, %arg1: i32) -> (i32, i32) {
    %c0_i32 = arith.constant 0 : i32
    %c0_i32_0 = arith.constant 0 : i32
    %c0_i32_1 = arith.constant 0 : i32
    return %c0_i32, %c0_i32_0 : i32, i32
  }
  func.func @transform_4(%arg0: i32, %arg1: i32) -> (i32, i32) {
    %c0_i32 = arith.constant 0 : i32
    %c0_i32_0 = arith.constant 0 : i32
    %c0_i32_1 = arith.constant 0 : i32
    return %c0_i32, %c0_i32_0 : i32, i32
  }
  func.func @transform_5(%arg0: i32, %arg1: i32) -> (i32, i32, i32, i32) {
    %c0_i32 = arith.constant 0 : i32
    %c0_i32_0 = arith.constant 0 : i32
    %c0_i32_1 = arith.constant 0 : i32
    return %arg0, %arg1, %c0_i32, %c0_i32_0 : i32, i32, i32, i32
  }
}

</mosaic_0001>

<llo_original>
// kernel: tpu_custom_call.1
$region0: #{tpu_custom_call.1}
  #allocation0 [shape = 'u32[]', space=smem, size = 0x4, offset = 0x4, fixed_abs, tag = 'smem constant byte address 0x4 - core index']
  #allocation1 [shape = 'u32[72,128]{1,0:T(1,128)}', space=vmem, size = 0x9000, scoped, tag = 'internal scratch']
  %s0 = inlined_call_operand.hbm [shape: f32[2,16,16,128], index: 0, kind: input, shape index: {}]
  %s1 = inlined_call_operand.hbm [shape: f32[3,3,128], index: 1, kind: input, shape index: {}]
  %s2 = inlined_call_operand.vmem [shape: f32[1,128], index: 2, kind: input, shape index: {}]
  %s3 = inlined_call_operand.hbm [shape: bf16[128,128], index: 3, kind: input, shape index: {}]
  %s4 = inlined_call_operand.vmem [shape: f32[1,128], index: 4, kind: input, shape index: {}]
  %s5 = inlined_call_operand.vmem [shape: f32[2,1,196,128], index: 5, kind: output, shape index: {}]
  %s6 = sld [smem:[#allocation0]]
  $region65: #{tpu_custom_call.1} parent=0
    _
  %s8 = ssub.s32 1, %s6
  %s9 = scalar_select 0, %s8, %s6
  $region1: #{tpu_custom_call.1} parent=0
    #allocation2 [shape = 'u8[262144]{0}', space=vmem, size = 0x40000, scoped, tag = 'input window, operand 0']
    #allocation3 [shape = 's32[2]{0}', space=sflag, size = 0x8, scoped, tag = 'scoped memory for tpu_custom_call.1']
    #allocation4 [shape = 'u8[6144]{0}', space=vmem, size = 0x1800, scoped, tag = 'input window, operand 1, single buffered']
    #allocation5 [shape = 's32[1]{0}', space=sflag, size = 0x4, scoped, tag = 'scoped memory for tpu_custom_call.1']
    #allocation6 [shape = 'u8[32768]{0}', space=vmem, size = 0x8000, scoped, tag = 'input window, operand 3, single buffered']
    %10 = vsyncpa [#allocation3], 0
    %s11 = scalar_lea.sflag [#allocation3], 1
    %12 = vsyncpa %s11, 0
    %13 = vsyncpa [#allocation5], 0
    loop: start=0, step=1, limit=4
    $region2: #{tpu_custom_call.1} parent=1 // loop_pre_header
      _
    $region3: #{tpu_custom_call.1} parent=1 // loop_header
      %s15 = sphi 0, %s19
      %p16 = scmp.ge.s32.totalorder %s15, 4
      %s22 = sphi 0, %s34
      %s23 = sphi 0, %s30
      %s24 = sphi 0, %s22
      %s25 = sphi 0, %s23
      %s26 = sphi 0, %s24
      %s27 = sphi 0, %s25
      %s37 = sphi 0, %s39
      %s40 = sphi 0, %s37
      %s41 = sphi 0, %s40
      %s57 = sphi 0, %s41
      %s61 = sphi 0, %s61
      %s63 = sphi 0, %s61
      %s64 = sphi 0, %s63
      %s78 = sphi 0, %s64
      %s82 = sphi 0, %s82
      %s84 = sphi 0, %s82
      %s85 = sphi 0, %s84
      %s99 = sphi 0, %s85
      %s103 = sphi 0, %s103
      %s105 = sphi 0, %s103
      %s106 = sphi 0, %s105
      %s120 = sphi 0, %s106
      %s124 = sphi 0, %s124
      %s126 = sphi 0, %s124
      %s127 = sphi 0, %s126
      %s141 = sphi 0, %s127
      %s149 = sphi 0, %s151
      %s152 = sphi 0, %s149
      %s153 = sphi 0, %s152
      %s169 = sphi 0, %s153
    $region4: #{tpu_custom_call.1} parent=1 // loop_header_branch
      %18 = sbr.rel (%p16) target = $region8
    $region5: #{tpu_custom_call.1} parent=1 // loop_body
      %s20 = ssub.s32 %s15, 1
      %s21 = ssub.s32 %s15, 2
      %s28 = sadd.s32 1, %s23
      %p29 = scmp.ge.s32.totalorder %s28, 1
      %s30 = scalar_select %p29, 0, %s28
      %s31 = sadd.s32 1, %s22
      %s32 = scalar_select %p29, %s31, %s22
      %p33 = scmp.ge.s32.totalorder %s32, 2
      %s34 = scalar_select %p33, 0, %s32
      %s35 = ssub.s32 %s22, %s34
      %p36 = scmp.eq.s32.totalorder %s35, 0
      %s38 = sadd.s32 %s37, 1
      %s39 = scalar_select %p36, %s37, %s38
      %p42 = pneg %p36
      %p43 = scmp.eq.s32.totalorder %s15, 1
      %p44 = por %p42, %p43
      %p45 = scmp.ne.s32.totalorder %s37, %s40
      %p46 = scmp.eq.s32.totalorder %s15, 0
      %p47 = por %p45, %p46
      %p48 = scmp.ne.s32.totalorder %s37, %s40
      %p49 = scmp.eq.s32.totalorder %s20, 1
      %p50 = por %p48, %p49
      %p51 = scmp.ne.s32.totalorder %s40, %s41
      %p52 = scmp.eq.s32.totalorder %s20, 0
      %p53 = por %p51, %p52
      %p54 = scmp.ne.s32.totalorder %s40, %s41
      %p55 = scmp.eq.s32.totalorder %s21, 1
      %p56 = por %p54, %p55
      %p58 = scmp.ne.s32.totalorder %s41, %s57
      %p59 = scmp.eq.s32.totalorder %s21, 0
      %p60 = por %p58, %p59
      %s62 = sadd.s32 %s61, 1
      %p65 = scmp.eq.s32.totalorder %s15, 1
      %p66 = scmp.ne.s32.totalorder %s61, %s63
      %p67 = scmp.eq.s32.totalorder %s15, 0
      %p68 = por %p66, %p67
      %p69 = scmp.ne.s32.totalorder %s61, %s63
      %p70 = scmp.eq.s32.totalorder %s20, 1
      %p71 = por %p69, %p70
      %p72 = scmp.ne.s32.totalorder %s63, %s64
      %p73 = scmp.eq.s32.totalorder %s20, 0
      %p74 = por %p72, %p73
      %p75 = scmp.ne.s32.totalorder %s63, %s64
      %p76 = scmp.eq.s32.totalorder %s21, 1
      %p77 = por %p75, %p76
      %p79 = scmp.ne.s32.totalorder %s64, %s78
      %p80 = scmp.eq.s32.totalorder %s21, 0
      %p81 = por %p79, %p80
      %s83 = sadd.s32 %s82, 1
      %p86 = scmp.eq.s32.totalorder %s15, 1
      %p87 = scmp.ne.s32.totalorder %s82, %s84
      %p88 = scmp.eq.s32.totalorder %s15, 0
      %p89 = por %p87, %p88
      %p90 = scmp.ne.s32.totalorder %s82, %s84
      %p91 = scmp.eq.s32.totalorder %s20, 1
      %p92 = por %p90, %p91
      %p93 = scmp.ne.s32.totalorder %s84, %s85
      %p94 = scmp.eq.s32.totalorder %s20, 0
      %p95 = por %p93, %p94
      %p96 = scmp.ne.s32.totalorder %s84, %s85
      %p97 = scmp.eq.s32.totalorder %s21, 1
      %p98 = por %p96, %p97
      %p100 = scmp.ne.s32.totalorder %s85, %s99
      %p101 = scmp.eq.s32.totalorder %s21, 0
      %p102 = por %p100, %p101
      %s104 = sadd.s32 %s103, 1
      %p107 = scmp.eq.s32.totalorder %s15, 1
      %p108 = scmp.ne.s32.totalorder %s103, %s105
      %p109 = scmp.eq.s32.totalorder %s15, 0
      %p110 = por %p108, %p109
      %p111 = scmp.ne.s32.totalorder %s103, %s105
      %p112 = scmp.eq.s32.totalorder %s20, 1
      %p113 = por %p111, %p112
      %p114 = scmp.ne.s32.totalorder %s105, %s106
      %p115 = scmp.eq.s32.totalorder %s20, 0
      %p116 = por %p114, %p115
      %p117 = scmp.ne.s32.totalorder %s105, %s106
      %p118 = scmp.eq.s32.totalorder %s21, 1
      %p119 = por %p117, %p118
      %p121 = scmp.ne.s32.totalorder %s106, %s120
      %p122 = scmp.eq.s32.totalorder %s21, 0
      %p123 = por %p121, %p122
      %s125 = sadd.s32 %s124, 1
      %p128 = scmp.eq.s32.totalorder %s15, 1
      %p129 = scmp.ne.s32.totalorder %s124, %s126
      %p130 = scmp.eq.s32.totalorder %s15, 0
      %p131 = por %p129, %p130
      %p132 = scmp.ne.s32.totalorder %s124, %s126
      %p133 = scmp.eq.s32.totalorder %s20, 1
      %p134 = por %p132, %p133
      %p135 = scmp.ne.s32.totalorder %s126, %s127
      %p136 = scmp.eq.s32.totalorder %s20, 0
      %p137 = por %p135, %p136
      %p138 = scmp.ne.s32.totalorder %s126, %s127
      %p139 = scmp.eq.s32.totalorder %s21, 1
      %p140 = por %p138, %p139
      %p142 = scmp.ne.s32.totalorder %s127, %s141
      %p143 = scmp.eq.s32.totalorder %s21, 0
      %p144 = por %p142, %p143
      %s145 = ssub.s32 %s22, %s34
      %s146 = ssub.s32 %s23, %s30
      %s147 = sor.u32 %s145, %s146
      %p148 = scmp.eq.s32.totalorder %s147, 0
      %s150 = sadd.s32 %s149, 1
      %s151 = scalar_select %p148, %s149, %s150
      %p154 = pneg %p148
      %p155 = scmp.eq.s32.totalorder %s15, 1
      %p156 = por %p154, %p155
      %p157 = scmp.ne.s32.totalorder %s149, %s152
      %p158 = scmp.eq.s32.totalorder %s15, 0
      %p159 = por %p157, %p158
      %p160 = scmp.ne.s32.totalorder %s149, %s152
      %p161 = scmp.eq.s32.totalorder %s20, 1
      %p162 = por %p160, %p161
      %p163 = scmp.ne.s32.totalorder %s152, %s153
      %p164 = scmp.eq.s32.totalorder %s20, 0
      %p165 = por %p163, %p164
      %p166 = scmp.ne.s32.totalorder %s152, %s153
      %p167 = scmp.eq.s32.totalorder %s21, 1
      %p168 = por %p166, %p167
      %p170 = scmp.ne.s32.totalorder %s153, %s169
      %p171 = scmp.eq.s32.totalorder %s21, 0
      %p172 = por %p170, %p171
      %p173 = scmp.le.s32.totalorder 1, %s15
      %p174 = scmp.lt.s32.totalorder %s15, 3
      %p175 = pnand %p173, %p174
      %p176 = pneg %p175
      // Predicated region
      $region9: #{tpu_custom_call.1} parent=5 // pred_check
        _
      $region10: #{tpu_custom_call.1} parent=5 // pred_check_branch
        %178 = sbr.rel (%p175) target = $region12
      $region11: #{tpu_custom_call.1} parent=5 // pred_region
        %s179 = ssub.s32 %s15, 1
        // Predicated region
        $region13: #{tpu_custom_call.1} parent=11 // pred_check
          %p180 = pneg %p74
        $region14: #{tpu_custom_call.1} parent=11 // pred_check_branch
          %182 = sbr.rel (%p180) target = $region16
        $region15: #{tpu_custom_call.1} parent=11 // pred_region
          %184 = vsyncadd [#allocation5], 0
          %s185 = sshll.u32 %s1, 4
          %s186 = int_to_ptr.hbm [resolvable:$true] %s185
          %s187 = sshll.u32 [#allocation4], 4
          %s188 = int_to_ptr.vmem [resolvable:$true] %s187
          %193 = dma.hbm_to_vmem [thread:$0]  %s186, 192, %s188, [#allocation5], 64, 64, 4
        $region16: #{tpu_custom_call.1} parent=11 // pred_fallthru
          _
        // Predicated region
        $region17: #{tpu_custom_call.1} parent=11 // pred_check
          %p194 = pneg %p95
        $region18: #{tpu_custom_call.1} parent=11 // pred_check_branch
          %196 = sbr.rel (%p194) target = $region20
        $region19: #{tpu_custom_call.1} parent=11 // pred_region
          _
        $region20: #{tpu_custom_call.1} parent=11 // pred_fallthru
          _
        // Predicated region
        $region21: #{tpu_custom_call.1} parent=11 // pred_check
          %p197 = pneg %p116
        $region22: #{tpu_custom_call.1} parent=11 // pred_check_branch
          %199 = sbr.rel (%p197) target = $region24
        $region23: #{tpu_custom_call.1} parent=11 // pred_region
          %201 = vsyncadd [#allocation5], 0
          %s202 = sshll.u32 %s3, 4
          %s203 = int_to_ptr.hbm [resolvable:$true] %s202
          %s204 = sshll.u32 [#allocation6], 4
          %s205 = int_to_ptr.vmem [resolvable:$true] %s204
          %210 = dma.hbm_to_vmem [thread:$0]  %s203, 1024, %s205, [#allocation5], 64, 64, 4
        $region24: #{tpu_custom_call.1} parent=11 // pred_fallthru
          _
        // Predicated region
        $region25: #{tpu_custom_call.1} parent=11 // pred_check
          %p211 = pneg %p137
        $region26: #{tpu_custom_call.1} parent=11 // pred_check_branch
          %213 = sbr.rel (%p211) target = $region28
        $region27: #{tpu_custom_call.1} parent=11 // pred_region
          _
        $region28: #{tpu_custom_call.1} parent=11 // pred_fallthru
          _
      $region12: #{tpu_custom_call.1} parent=5 // pred_fallthru
        _
      %p214 = scmp.lt.s32.totalorder %s15, 2
      // Predicated region
      $region29: #{tpu_custom_call.1} parent=5 // pred_check
        %p215 = pneg %p214
      $region30: #{tpu_custom_call.1} parent=5 // pred_check_branch
        %217 = sbr.rel (%p215) target = $region32
      $region31: #{tpu_custom_call.1} parent=5 // pred_region
        // Predicated region
        $region33: #{tpu_custom_call.1} parent=31 // pred_check
          %p218 = pneg %p47
        $region34: #{tpu_custom_call.1} parent=31 // pred_check_branch
          %220 = sbr.rel (%p218) target = $region36
        $region35: #{tpu_custom_call.1} parent=31 // pred_region
          %s221 = sand.u32 %s37, 1
          %s222 = scalar_lea.sflag [#allocation3], %s221
          %s223 = sand.u32 %s37, 1
          %s224 = smul.addr %s223, 256
          %s225 = scalar_lea.vmem [#allocation2], %s224
          %227 = vsyncadd %s222, 0
          %s228 = smul.addr %s22, 32
          %s229 = smul.addr %s228, 8
          %s230 = scalar_lea.hbm %s0, %s229
          %s231 = sshll.u32 %s230, 4
          %s232 = int_to_ptr.hbm [resolvable:$true] %s231
          %s233 = sshll.u32 %s225, 4
          %s234 = int_to_ptr.vmem [resolvable:$true] %s233
          %239 = dma.hbm_to_vmem [thread:$0]  %s232, 4096, %s234, %s222, 128, 128, 8
        $region36: #{tpu_custom_call.1} parent=31 // pred_fallthru
          _
      $region32: #{tpu_custom_call.1} parent=5 // pred_fallthru
        _
      %p240 = scmp.le.s32.totalorder 1, %s15
      %p241 = scmp.lt.s32.totalorder %s15, 3
      %p242 = pnand %p240, %p241
      %p243 = pneg %p242
      // Predicated region
      $region37: #{tpu_custom_call.1} parent=5 // pred_check
        _
      $region38: #{tpu_custom_call.1} parent=5 // pred_check_branch
        %245 = sbr.rel (%p242) target = $region40
      $region39: #{tpu_custom_call.1} parent=5 // pred_region
        %s246 = ssub.s32 %s15, 1
        %s247 = sand.u32 %s40, 1
        %s248 = scalar_lea.sflag [#allocation3], %s247
        %s249 = sand.u32 %s40, 1
        %s250 = smul.addr %s249, 256
        %s251 = scalar_lea.vmem [#allocation2], %s250
        // Predicated region
        $region41: #{tpu_custom_call.1} parent=39 // pred_check
          %p252 = pneg %p53
        $region42: #{tpu_custom_call.1} parent=39 // pred_check_branch
          %254 = sbr.rel (%p252) target = $region44
        $region43: #{tpu_custom_call.1} parent=39 // pred_region
          %256 = dma.done %s248, 4096
        $region44: #{tpu_custom_call.1} parent=39 // pred_fallthru
          _
        // Predicated region
        $region45: #{tpu_custom_call.1} parent=39 // pred_check
          %p257 = pneg %p74
        $region46: #{tpu_custom_call.1} parent=39 // pred_check_branch
          %259 = sbr.rel (%p257) target = $region48
        $region47: #{tpu_custom_call.1} parent=39 // pred_region
          %261 = dma.done [#allocation5], 192
        $region48: #{tpu_custom_call.1} parent=39 // pred_fallthru
          _
        // Predicated region
        $region49: #{tpu_custom_call.1} parent=39 // pred_check
          %p262 = pneg %p116
        $region50: #{tpu_custom_call.1} parent=39 // pred_check_branch
          %264 = sbr.rel (%p262) target = $region52
        $region51: #{tpu_custom_call.1} parent=39 // pred_region
          %266 = dma.done [#allocation5], 1024
        $region52: #{tpu_custom_call.1} parent=39 // pred_fallthru
          _
        %s267 = sand.u32 %s40, 1
        %s268 = scalar_lea.sflag [#allocation3], %s267
        %s269 = sand.u32 %s40, 1
        %s270 = smul.addr %s269, 256
        %s271 = scalar_lea.vmem [#allocation2], %s270
        %p272 = pneg %p53
        %p273 = pneg %p50
        %p274 = pneg %p74
        %p275 = pneg %p71
        %p276 = pneg %p95
        %p277 = pneg %p92
        %p278 = pneg %p116
        %p279 = pneg %p113
        %p280 = pneg %p137
        %p281 = pneg %p134
        %p282 = pneg %p165
        %p283 = pneg %p162
        %p284 = scmp.lt.s32.totalorder %s24, 1
        %s285 = scalar_select %p284, %s24, 1
        %p286 = scmp.lt.s32.totalorder %s25, 0
        %s287 = scalar_select %p286, %s25, 0
        %s288 = smul.addr %s287, 25
        %s289 = smul.addr %s285, 25
        %s290 = sadd.s32 %s288, %s289
        %s291 = smul.addr %s290, 8
        %s292 = scalar_lea.vmem %s5, %s291
        %p293 = scmp.lt.s32.totalorder %s24, 1
        %s294 = scalar_select %p293, %s24, 1
        %p295 = scmp.lt.s32.totalorder %s25, 0
        %s296 = scalar_select %p295, %s25, 0
        %s297 = smul.addr %s296, 25
        %s298 = smul.addr %s294, 25
        %s299 = sadd.s32 %s297, %s298
        %s300 = smul.addr %s299, 8
        %s301 = scalar_lea.vmem %s5, %s300
        %v302 = vld [vmem:[#allocation4] sm:$0x7]
        %v303 = vld [vmem:[#allocation4 + $0x4] sm:$0x7]
        %v304 = vld [vmem:[#allocation4 + $0x8] sm:$0x7]
        %s305 = smul.u32 %s25, 14
        %s306 = smul.u32 %s305, 16
        %s307 = scalar_lea.vmem %s251, %s306 [#allocation2]
        %v308 = vld [vmem:[%s307] sm:$0xff]
        %v309 = vld [vmem:[%s307 + $0x8] sm:$0xff]
        %v310 = vld [vmem:[%s307 + $0x10] sm:$0xff]
        %v311 = vld [vmem:[%s307 + $0x18] sm:$0xff]
        %v312 = vld [vmem:[%s307 + $0x20] sm:$0xff]
        %v313 = vld [vmem:[%s307 + $0x28] sm:$0xff]
        %v314 = vld [vmem:[%s307 + $0x30] sm:$0xff]
        %v315 = vld [vmem:[%s307 + $0x38] sm:$0xff]
        %v316 = vld [vmem:[%s307 + $0x40] sm:$0xff]
        %v317 = vld [vmem:[%s307 + $0x48] sm:$0xff]
        %v318 = vld [vmem:[%s307 + $0x50] sm:$0xff]
        %v319 = vld [vmem:[%s307 + $0x58] sm:$0xff]
        %v320 = vld [vmem:[%s307 + $0x60] sm:$0xff]
        %v321 = vld [vmem:[%s307 + $0x68] sm:$0xff]
        %v322 = vld [vmem:[%s307 + $0x70] sm:$0xff]
        %v323 = vld [vmem:[%s307 + $0x78] sm:$0xff]
        %v324 = vld [vmem:[%s307 + $0x80] sm:$0xff]
        %v325 = vld [vmem:[%s307 + $0x88] sm:$0xff]
        %v326 = vld [vmem:[%s307 + $0x90] sm:$0xff]
        %v327 = vld [vmem:[%s307 + $0x98] sm:$0xff]
        %v328 = vld [vmem:[%s307 + $0xa0] sm:$0xff]
        %v329 = vld [vmem:[%s307 + $0xa8] sm:$0xff]
        %v330 = vld [vmem:[%s307 + $0xb0] sm:$0xff]
        %v331 = vld [vmem:[%s307 + $0xb8] sm:$0xff]
        %v332 = vld [vmem:[%s307 + $0xc0] sm:$0xff]
        %v333 = vld [vmem:[%s307 + $0xc8] sm:$0xff]
        %v334 = vld [vmem:[%s307 + $0xd0] sm:$0xff]
        %v335 = vld [vmem:[%s307 + $0xd8] sm:$0xff]
        %v336 = vperm.slane %v302, 0
        %v337 = vmul.f32 %v308, %v336
        %v338 = vmul.f32 %v309, %v336
        %v339 = vmul.f32 %v310, %v336
        %v340 = vmul.f32 %v311, %v336
        %v341 = vmul.f32 %v312, %v336
        %v342 = vmul.f32 %v313, %v336
        %v343 = vmul.f32 %v314, %v336
        %v344 = vmul.f32 %v315, %v336
        %v345 = vmul.f32 %v316, %v336
        %v346 = vmul.f32 %v317, %v336
        %v347 = vmul.f32 %v318, %v336
        %v348 = vmul.f32 %v319, %v336
        %v349 = vmul.f32 %v320, %v336
        %v350 = vmul.f32 %v321, %v336
        %v351 = vmul.f32 %v322, %v336
        %v352 = vmul.f32 %v323, %v336
        %v353 = vmul.f32 %v324, %v336
        %v354 = vmul.f32 %v325, %v336
        %v355 = vmul.f32 %v326, %v336
        %v356 = vmul.f32 %v327, %v336
        %v357 = vmul.f32 %v328, %v336
        %v358 = vmul.f32 %v329, %v336
        %v359 = vmul.f32 %v330, %v336
        %v360 = vmul.f32 %v331, %v336
        %v361 = vmul.f32 %v332, %v336
        %v362 = vmul.f32 %v333, %v336
        %v363 = vmul.f32 %v334, %v336
        %v364 = vmul.f32 %v335, %v336
        %v365 = vadd.f32 %v337, 0.0
        %v366 = vadd.f32 %v338, 0.0
        %v367 = vadd.f32 %v339, 0.0
        %v368 = vadd.f32 %v340, 0.0
        %v369 = vadd.f32 %v341, 0.0
        %v370 = vadd.f32 %v342, 0.0
        %v371 = vadd.f32 %v343, 0.0
        %v372 = vadd.f32 %v344, 0.0
        %v373 = vadd.f32 %v345, 0.0
        %v374 = vadd.f32 %v346, 0.0
        %v375 = vadd.f32 %v347, 0.0
        %v376 = vadd.f32 %v348, 0.0
        %v377 = vadd.f32 %v349, 0.0
        %v378 = vadd.f32 %v350, 0.0
        %v379 = vadd.f32 %v351, 0.0
        %v380 = vadd.f32 %v352, 0.0
        %v381 = vadd.f32 %v353, 0.0
        %v382 = vadd.f32 %v354, 0.0
        %v383 = vadd.f32 %v355, 0.0
        %v384 = vadd.f32 %v356, 0.0
        %v385 = vadd.f32 %v357, 0.0
        %v386 = vadd.f32 %v358, 0.0
        %v387 = vadd.f32 %v359, 0.0
        %v388 = vadd.f32 %v360, 0.0
        %v389 = vadd.f32 %v361, 0.0
        %v390 = vadd.f32 %v362, 0.0
        %v391 = vadd.f32 %v363, 0.0
        %v392 = vadd.f32 %v364, 0.0
        %v393 = vperm.slane %v302, 1
        %v394 = vmul.f32 %v308, %v393
        %v395 = vmul.f32 %v309, %v393
        %v396 = vmul.f32 %v310, %v393
        %v397 = vmul.f32 %v311, %v393
        %v398 = vmul.f32 %v312, %v393
        %v399 = vmul.f32 %v313, %v393
        %v400 = vmul.f32 %v314, %v393
        %v401 = vmul.f32 %v315, %v393
        %v402 = vmul.f32 %v316, %v393
        %v403 = vmul.f32 %v317, %v393
        %v404 = vmul.f32 %v318, %v393
        %v405 = vmul.f32 %v319, %v393
        %v406 = vmul.f32 %v320, %v393
        %v407 = vmul.f32 %v321, %v393
        %v408 = vmul.f32 %v322, %v393
        %v409 = vmul.f32 %v323, %v393
        %v410 = vmul.f32 %v324, %v393
        %v411 = vmul.f32 %v325, %v393
        %v412 = vmul.f32 %v326, %v393
        %v413 = vmul.f32 %v327, %v393
        %v414 = vmul.f32 %v328, %v393
        %v415 = vmul.f32 %v329, %v393
        %v416 = vmul.f32 %v330, %v393
        %v417 = vmul.f32 %v331, %v393
        %v418 = vmul.f32 %v332, %v393
        %v419 = vmul.f32 %v333, %v393
        %v420 = vmul.f32 %v334, %v393
        %v421 = vmul.f32 %v335, %v393
        %vm450 = vcmask 1046528
        %v451 = vrot.slane %v394, 1
        %v452 = vrot.slane %v395, 1
        %v453 = vsel %vm450, %v451, %v452
        %v454 = vrot.slane %v396, 1
        %v455 = vrot.slane %v397, 1
        %v456 = vsel %vm450, %v454, %v455
        %v457 = vrot.slane %v398, 1
        %v458 = vrot.slane %v399, 1
        %v459 = vsel %vm450, %v457, %v458
        %v460 = vrot.slane %v400, 1
        %v461 = vrot.slane %v401, 1
        %v462 = vsel %vm450, %v460, %v461
        %v463 = vrot.slane %v402, 1
        %v464 = vrot.slane %v403, 1
        %v465 = vsel %vm450, %v463, %v464
        %v466 = vrot.slane %v404, 1
        %v467 = vrot.slane %v405, 1
        %v468 = vsel %vm450, %v466, %v467
        %v469 = vrot.slane %v406, 1
        %v470 = vrot.slane %v407, 1
        %v471 = vsel %vm450, %v469, %v470
        %v472 = vrot.slane %v408, 1
        %v473 = vrot.slane %v409, 1
        %v474 = vsel %vm450, %v472, %v473
        %v475 = vrot.slane %v410, 1
        %v476 = vrot.slane %v411, 1
        %v477 = vsel %vm450, %v475, %v476
        %v478 = vrot.slane %v412, 1
        %v479 = vrot.slane %v413, 1
        %v480 = vsel %vm450, %v478, %v479
        %v481 = vrot.slane %v414, 1
        %v482 = vrot.slane %v415, 1
        %v483 = vsel %vm450, %v481, %v482
        %v484 = vrot.slane %v416, 1
        %v485 = vrot.slane %v417, 1
        %v486 = vsel %vm450, %v484, %v485
        %v487 = vrot.slane %v418, 1
        %v488 = vrot.slane %v419, 1
        %v489 = vsel %vm450, %v487, %v488
        %v490 = vrot.slane %v420, 1
        %v491 = vrot.slane %v421, 1
        %v492 = vsel %vm450, %v490, %v491
        %v521 = vadd.f32 %v365, %v453
        %v522 = vadd.f32 %v366, %v452
        %v523 = vadd.f32 %v367, %v456
        %v524 = vadd.f32 %v368, %v455
        %v525 = vadd.f32 %v369, %v459
        %v526 = vadd.f32 %v370, %v458
        %v527 = vadd.f32 %v371, %v462
        %v528 = vadd.f32 %v372, %v461
        %v529 = vadd.f32 %v373, %v465
        %v530 = vadd.f32 %v374, %v464
        %v531 = vadd.f32 %v375, %v468
        %v532 = vadd.f32 %v376, %v467
        %v533 = vadd.f32 %v377, %v471
        %v534 = vadd.f32 %v378, %v470
        %v535 = vadd.f32 %v379, %v474
        %v536 = vadd.f32 %v380, %v473
        %v537 = vadd.f32 %v381, %v477
        %v538 = vadd.f32 %v382, %v476
        %v539 = vadd.f32 %v383, %v480
        %v540 = vadd.f32 %v384, %v479
        %v541 = vadd.f32 %v385, %v483
        %v542 = vadd.f32 %v386, %v482
        %v543 = vadd.f32 %v387, %v486
        %v544 = vadd.f32 %v388, %v485
        %v545 = vadd.f32 %v389, %v489
        %v546 = vadd.f32 %v390, %v488
        %v547 = vadd.f32 %v391, %v492
        %v548 = vadd.f32 %v392, %v491
        %v549 = vperm.slane %v302, 2
        %v550 = vmul.f32 %v308, %v549
        %v551 = vmul.f32 %v309, %v549
        %v552 = vmul.f32 %v310, %v549
        %v553 = vmul.f32 %v311, %v549
        %v554 = vmul.f32 %v312, %v549
        %v555 = vmul.f32 %v313, %v549
        %v556 = vmul.f32 %v314, %v549
        %v557 = vmul.f32 %v315, %v549
        %v558 = vmul.f32 %v316, %v549
        %v559 = vmul.f32 %v317, %v549
        %v560 = vmul.f32 %v318, %v549
        %v561 = vmul.f32 %v319, %v549
        %v562 = vmul.f32 %v320, %v549
        %v563 = vmul.f32 %v321, %v549
        %v564 = vmul.f32 %v322, %v549
        %v565 = vmul.f32 %v323, %v549
        %v566 = vmul.f32 %v324, %v549
        %v567 = vmul.f32 %v325, %v549
        %v568 = vmul.f32 %v326, %v549
        %v569 = vmul.f32 %v327, %v549
        %v570 = vmul.f32 %v328, %v549
        %v571 = vmul.f32 %v329, %v549
        %v572 = vmul.f32 %v330, %v549
        %v573 = vmul.f32 %v331, %v549
        %v574 = vmul.f32 %v332, %v549
        %v575 = vmul.f32 %v333, %v549
        %v576 = vmul.f32 %v334, %v549
        %v577 = vmul.f32 %v335, %v549
        %vm606 = vcmask 1045504
        %v607 = vrot.slane %v550, 2
        %v608 = vrot.slane %v551, 2
        %v609 = vsel %vm606, %v607, %v608
        %v610 = vrot.slane %v552, 2
        %v611 = vrot.slane %v553, 2
        %v612 = vsel %vm606, %v610, %v611
        %v613 = vrot.slane %v554, 2
        %v614 = vrot.slane %v555, 2
        %v615 = vsel %vm606, %v613, %v614
        %v616 = vrot.slane %v556, 2
        %v617 = vrot.slane %v557, 2
        %v618 = vsel %vm606, %v616, %v617
        %v619 = vrot.slane %v558, 2
        %v620 = vrot.slane %v559, 2
        %v621 = vsel %vm606, %v619, %v620
        %v622 = vrot.slane %v560, 2
        %v623 = vrot.slane %v561, 2
        %v624 = vsel %vm606, %v622, %v623
        %v625 = vrot.slane %v562, 2
        %v626 = vrot.slane %v563, 2
        %v627 = vsel %vm606, %v625, %v626
        %v628 = vrot.slane %v564, 2
        %v629 = vrot.slane %v565, 2
        %v630 = vsel %vm606, %v628, %v629
        %v631 = vrot.slane %v566, 2
        %v632 = vrot.slane %v567, 2
        %v633 = vsel %vm606, %v631, %v632
        %v634 = vrot.slane %v568, 2
        %v635 = vrot.slane %v569, 2
        %v636 = vsel %vm606, %v634, %v635
        %v637 = vrot.slane %v570, 2
        %v638 = vrot.slane %v571, 2
        %v639 = vsel %vm606, %v637, %v638
        %v640 = vrot.slane %v572, 2
        %v641 = vrot.slane %v573, 2
        %v642 = vsel %vm606, %v640, %v641
        %v643 = vrot.slane %v574, 2
        %v644 = vrot.slane %v575, 2
        %v645 = vsel %vm606, %v643, %v644
        %v646 = vrot.slane %v576, 2
        %v647 = vrot.slane %v577, 2
        %v648 = vsel %vm606, %v646, %v647
        %v677 = vadd.f32 %v521, %v609
        %v678 = vadd.f32 %v522, %v608
        %v679 = vadd.f32 %v523, %v612
        %v680 = vadd.f32 %v524, %v611
        %v681 = vadd.f32 %v525, %v615
        %v682 = vadd.f32 %v526, %v614
        %v683 = vadd.f32 %v527, %v618
        %v684 = vadd.f32 %v528, %v617
        %v685 = vadd.f32 %v529, %v621
        %v686 = vadd.f32 %v530, %v620
        %v687 = vadd.f32 %v531, %v624
        %v688 = vadd.f32 %v532, %v623
        %v689 = vadd.f32 %v533, %v627
        %v690 = vadd.f32 %v534, %v626
        %v691 = vadd.f32 %v535, %v630
        %v692 = vadd.f32 %v536, %v629
        %v693 = vadd.f32 %v537, %v633
        %v694 = vadd.f32 %v538, %v632
        %v695 = vadd.f32 %v539, %v636
        %v696 = vadd.f32 %v540, %v635
        %v697 = vadd.f32 %v541, %v639
        %v698 = vadd.f32 %v542, %v638
        %v699 = vadd.f32 %v543, %v642
        %v700 = vadd.f32 %v544, %v641
        %v701 = vadd.f32 %v545, %v645
        %v702 = vadd.f32 %v546, %v644
        %v703 = vadd.f32 %v547, %v648
        %v704 = vadd.f32 %v548, %v647
        %s705 = sadd.s32 %s305, 1
        %s706 = smul.u32 %s705, 16
        %s707 = scalar_lea.vmem %s251, %s706 [#allocation2]
        %v708 = vld [vmem:[%s707] sm:$0xff]
        %v709 = vld [vmem:[%s707 + $0x8] sm:$0xff]
        %v710 = vld [vmem:[%s707 + $0x10] sm:$0xff]
        %v711 = vld [vmem:[%s707 + $0x18] sm:$0xff]
        %v712 = vld [vmem:[%s707 + $0x20] sm:$0xff]
        %v713 = vld [vmem:[%s707 + $0x28] sm:$0xff]
        %v714 = vld [vmem:[%s707 + $0x30] sm:$0xff]
        %v715 = vld [vmem:[%s707 + $0x38] sm:$0xff]
        %v716 = vld [vmem:[%s707 + $0x40] sm:$0xff]
        %v717 = vld [vmem:[%s707 + $0x48] sm:$0xff]
        %v718 = vld [vmem:[%s707 + $0x50] sm:$0xff]
        %v719 = vld [vmem:[%s707 + $0x58] sm:$0xff]
        %v720 = vld [vmem:[%s707 + $0x60] sm:$0xff]
        %v721 = vld [vmem:[%s707 + $0x68] sm:$0xff]
        %v722 = vld [vmem:[%s707 + $0x70] sm:$0xff]
        %v723 = vld [vmem:[%s707 + $0x78] sm:$0xff]
        %v724 = vld [vmem:[%s707 + $0x80] sm:$0xff]
        %v725 = vld [vmem:[%s707 + $0x88] sm:$0xff]
        %v726 = vld [vmem:[%s707 + $0x90] sm:$0xff]
        %v727 = vld [vmem:[%s707 + $0x98] sm:$0xff]
        %v728 = vld [vmem:[%s707 + $0xa0] sm:$0xff]
        %v729 = vld [vmem:[%s707 + $0xa8] sm:$0xff]
        %v730 = vld [vmem:[%s707 + $0xb0] sm:$0xff]
        %v731 = vld [vmem:[%s707 + $0xb8] sm:$0xff]
        %v732 = vld [vmem:[%s707 + $0xc0] sm:$0xff]
        %v733 = vld [vmem:[%s707 + $0xc8] sm:$0xff]
        %v734 = vld [vmem:[%s707 + $0xd0] sm:$0xff]
        %v735 = vld [vmem:[%s707 + $0xd8] sm:$0xff]
        %v736 = vperm.slane %v303, 0
        %v737 = vmul.f32 %v708, %v736
        %v738 = vmul.f32 %v709, %v736
        %v739 = vmul.f32 %v710, %v736
        %v740 = vmul.f32 %v711, %v736
        %v741 = vmul.f32 %v712, %v736
        %v742 = vmul.f32 %v713, %v736
        %v743 = vmul.f32 %v714, %v736
        %v744 = vmul.f32 %v715, %v736
        %v745 = vmul.f32 %v716, %v736
        %v746 = vmul.f32 %v717, %v736
        %v747 = vmul.f32 %v718, %v736
        %v748 = vmul.f32 %v719, %v736
        %v749 = vmul.f32 %v720, %v736
        %v750 = vmul.f32 %v721, %v736
        %v751 = vmul.f32 %v722, %v736
        %v752 = vmul.f32 %v723, %v736
        %v753 = vmul.f32 %v724, %v736
        %v754 = vmul.f32 %v725, %v736
        %v755 = vmul.f32 %v726, %v736
        %v756 = vmul.f32 %v727, %v736
        %v757 = vmul.f32 %v728, %v736
        %v758 = vmul.f32 %v729, %v736
        %v759 = vmul.f32 %v730, %v736
        %v760 = vmul.f32 %v731, %v736
        %v761 = vmul.f32 %v732, %v736
        %v762 = vmul.f32 %v733, %v736
        %v763 = vmul.f32 %v734, %v736
        %v764 = vmul.f32 %v735, %v736
        %v765 = vadd.f32 %v677, %v737
        %v766 = vadd.f32 %v678, %v738
        %v767 = vadd.f32 %v679, %v739
        %v768 = vadd.f32 %v680, %v740
        %v769 = vadd.f32 %v681, %v741
        %v770 = vadd.f32 %v682, %v742
        %v771 = vadd.f32 %v683, %v743
        %v772 = vadd.f32 %v684, %v744
        %v773 = vadd.f32 %v685, %v745
        %v774 = vadd.f32 %v686, %v746
        %v775 = vadd.f32 %v687, %v747
        %v776 = vadd.f32 %v688, %v748
        %v777 = vadd.f32 %v689, %v749
        %v778 = vadd.f32 %v690, %v750
        %v779 = vadd.f32 %v691, %v751
        %v780 = vadd.f32 %v692, %v752
        %v781 = vadd.f32 %v693, %v753
        %v782 = vadd.f32 %v694, %v754
        %v783 = vadd.f32 %v695, %v755
        %v784 = vadd.f32 %v696, %v756
        %v785 = vadd.f32 %v697, %v757
        %v786 = vadd.f32 %v698, %v758
        %v787 = vadd.f32 %v699, %v759
        %v788 = vadd.f32 %v700, %v760
        %v789 = vadd.f32 %v701, %v761
        %v790 = vadd.f32 %v702, %v762
        %v791 = vadd.f32 %v703, %v763
        %v792 = vadd.f32 %v704, %v764
        %v793 = vperm.slane %v303, 1
        %v794 = vmul.f32 %v708, %v793
        %v795 = vmul.f32 %v709, %v793
        %v796 = vmul.f32 %v710, %v793
        %v797 = vmul.f32 %v711, %v793
        %v798 = vmul.f32 %v712, %v793
        %v799 = vmul.f32 %v713, %v793
        %v800 = vmul.f32 %v714, %v793
        %v801 = vmul.f32 %v715, %v793
        %v802 = vmul.f32 %v716, %v793
        %v803 = vmul.f32 %v717, %v793
        %v804 = vmul.f32 %v718, %v793
        %v805 = vmul.f32 %v719, %v793
        %v806 = vmul.f32 %v720, %v793
        %v807 = vmul.f32 %v721, %v793
        %v808 = vmul.f32 %v722, %v793
        %v809 = vmul.f32 %v723, %v793
        %v810 = vmul.f32 %v724, %v793
        %v811 = vmul.f32 %v725, %v793
        %v812 = vmul.f32 %v726, %v793
        %v813 = vmul.f32 %v727, %v793
        %v814 = vmul.f32 %v728, %v793
        %v815 = vmul.f32 %v729, %v793
        %v816 = vmul.f32 %v730, %v793
        %v817 = vmul.f32 %v731, %v793
        %v818 = vmul.f32 %v732, %v793
        %v819 = vmul.f32 %v733, %v793
        %v820 = vmul.f32 %v734, %v793
        %v821 = vmul.f32 %v735, %v793
        %v850 = vrot.slane %v794, 1
        %v851 = vrot.slane %v795, 1
        %v852 = vsel %vm450, %v850, %v851
        %v853 = vrot.slane %v796, 1
        %v854 = vrot.slane %v797, 1
        %v855 = vsel %vm450, %v853, %v854
        %v856 = vrot.slane %v798, 1
        %v857 = vrot.slane %v799, 1
        %v858 = vsel %vm450, %v856, %v857
        %v859 = vrot.slane %v800, 1
        %v860 = vrot.slane %v801, 1
        %v861 = vsel %vm450, %v859, %v860
        %v862 = vrot.slane %v802, 1
        %v863 = vrot.slane %v803, 1
        %v864 = vsel %vm450, %v862, %v863
        %v865 = vrot.slane %v804, 1
        %v866 = vrot.slane %v805, 1
        %v867 = vsel %vm450, %v865, %v866
        %v868 = vrot.slane %v806, 1
        %v869 = vrot.slane %v807, 1
        %v870 = vsel %vm450, %v868, %v869
        %v871 = vrot.slane %v808, 1
        %v872 = vrot.slane %v809, 1
        %v873 = vsel %vm450, %v871, %v872
        %v874 = vrot.slane %v810, 1
        %v875 = vrot.slane %v811, 1
        %v876 = vsel %vm450, %v874, %v875
        %v877 = vrot.slane %v812, 1
        %v878 = vrot.slane %v813, 1
        %v879 = vsel %vm450, %v877, %v878
        %v880 = vrot.slane %v814, 1
        %v881 = vrot.slane %v815, 1
        %v882 = vsel %vm450, %v880, %v881
        %v883 = vrot.slane %v816, 1
        %v884 = vrot.slane %v817, 1
        %v885 = vsel %vm450, %v883, %v884
        %v886 = vrot.slane %v818, 1
        %v887 = vrot.slane %v819, 1
        %v888 = vsel %vm450, %v886, %v887
        %v889 = vrot.slane %v820, 1
        %v890 = vrot.slane %v821, 1
        %v891 = vsel %vm450, %v889, %v890
        %v920 = vadd.f32 %v765, %v852
        %v921 = vadd.f32 %v766, %v851
        %v922 = vadd.f32 %v767, %v855
        %v923 = vadd.f32 %v768, %v854
        %v924 = vadd.f32 %v769, %v858
        %v925 = vadd.f32 %v770, %v857
        %v926 = vadd.f32 %v771, %v861
        %v927 = vadd.f32 %v772, %v860
        %v928 = vadd.f32 %v773, %v864
        %v929 = vadd.f32 %v774, %v863
        %v930 = vadd.f32 %v775, %v867
        %v931 = vadd.f32 %v776, %v866
        %v932 = vadd.f32 %v777, %v870
        %v933 = vadd.f32 %v778, %v869
        %v934 = vadd.f32 %v779, %v873
        %v935 = vadd.f32 %v780, %v872
        %v936 = vadd.f32 %v781, %v876
        %v937 = vadd.f32 %v782, %v875
        %v938 = vadd.f32 %v783, %v879
        %v939 = vadd.f32 %v784, %v878
        %v940 = vadd.f32 %v785, %v882
        %v941 = vadd.f32 %v786, %v881
        %v942 = vadd.f32 %v787, %v885
        %v943 = vadd.f32 %v788, %v884
        %v944 = vadd.f32 %v789, %v888
        %v945 = vadd.f32 %v790, %v887
        %v946 = vadd.f32 %v791, %v891
        %v947 = vadd.f32 %v792, %v890
        %v948 = vperm.slane %v303, 2
        %v949 = vmul.f32 %v708, %v948
        %v950 = vmul.f32 %v709, %v948
        %v951 = vmul.f32 %v710, %v948
        %v952 = vmul.f32 %v711, %v948
        %v953 = vmul.f32 %v712, %v948
        %v954 = vmul.f32 %v713, %v948
        %v955 = vmul.f32 %v714, %v948
        %v956 = vmul.f32 %v715, %v948
        %v957 = vmul.f32 %v716, %v948
        %v958 = vmul.f32 %v717, %v948
        %v959 = vmul.f32 %v718, %v948
        %v960 = vmul.f32 %v719, %v948
        %v961 = vmul.f32 %v720, %v948
        %v962 = vmul.f32 %v721, %v948
        %v963 = vmul.f32 %v722, %v948
        %v964 = vmul.f32 %v723, %v948
        %v965 = vmul.f32 %v724, %v948
        %v966 = vmul.f32 %v725, %v948
        %v967 = vmul.f32 %v726, %v948
        %v968 = vmul.f32 %v727, %v948
        %v969 = vmul.f32 %v728, %v948
        %v970 = vmul.f32 %v729, %v948
        %v971 = vmul.f32 %v730, %v948
        %v972 = vmul.f32 %v731, %v948
        %v973 = vmul.f32 %v732, %v948
        %v974 = vmul.f32 %v733, %v948
        %v975 = vmul.f32 %v734, %v948
        %v976 = vmul.f32 %v735, %v948
        %v1005 = vrot.slane %v949, 2
        %v1006 = vrot.slane %v950, 2
        %v1007 = vsel %vm606, %v1005, %v1006
        %v1008 = vrot.slane %v951, 2
        %v1009 = vrot.slane %v952, 2
        %v1010 = vsel %vm606, %v1008, %v1009
        %v1011 = vrot.slane %v953, 2
        %v1012 = vrot.slane %v954, 2
        %v1013 = vsel %vm606, %v1011, %v1012
        %v1014 = vrot.slane %v955, 2
        %v1015 = vrot.slane %v956, 2
        %v1016 = vsel %vm606, %v1014, %v1015
        %v1017 = vrot.slane %v957, 2
        %v1018 = vrot.slane %v958, 2
        %v1019 = vsel %vm606, %v1017, %v1018
        %v1020 = vrot.slane %v959, 2
        %v1021 = vrot.slane %v960, 2
        %v1022 = vsel %vm606, %v1020, %v1021
        %v1023 = vrot.slane %v961, 2
        %v1024 = vrot.slane %v962, 2
        %v1025 = vsel %vm606, %v1023, %v1024
        %v1026 = vrot.slane %v963, 2
        %v1027 = vrot.slane %v964, 2
        %v1028 = vsel %vm606, %v1026, %v1027
        %v1029 = vrot.slane %v965, 2
        %v1030 = vrot.slane %v966, 2
        %v1031 = vsel %vm606, %v1029, %v1030
        %v1032 = vrot.slane %v967, 2
        %v1033 = vrot.slane %v968, 2
        %v1034 = vsel %vm606, %v1032, %v1033
        %v1035 = vrot.slane %v969, 2
        %v1036 = vrot.slane %v970, 2
        %v1037 = vsel %vm606, %v1035, %v1036
        %v1038 = vrot.slane %v971, 2
        %v1039 = vrot.slane %v972, 2
        %v1040 = vsel %vm606, %v1038, %v1039
        %v1041 = vrot.slane %v973, 2
        %v1042 = vrot.slane %v974, 2
        %v1043 = vsel %vm606, %v1041, %v1042
        %v1044 = vrot.slane %v975, 2
        %v1045 = vrot.slane %v976, 2
        %v1046 = vsel %vm606, %v1044, %v1045
        %v1075 = vadd.f32 %v920, %v1007
        %v1076 = vadd.f32 %v921, %v1006
        %v1077 = vadd.f32 %v922, %v1010
        %v1078 = vadd.f32 %v923, %v1009
        %v1079 = vadd.f32 %v924, %v1013
        %v1080 = vadd.f32 %v925, %v1012
        %v1081 = vadd.f32 %v926, %v1016
        %v1082 = vadd.f32 %v927, %v1015
        %v1083 = vadd.f32 %v928, %v1019
        %v1084 = vadd.f32 %v929, %v1018
        %v1085 = vadd.f32 %v930, %v1022
        %v1086 = vadd.f32 %v931, %v1021
        %v1087 = vadd.f32 %v932, %v1025
        %v1088 = vadd.f32 %v933, %v1024
        %v1089 = vadd.f32 %v934, %v1028
        %v1090 = vadd.f32 %v935, %v1027
        %v1091 = vadd.f32 %v936, %v1031
        %v1092 = vadd.f32 %v937, %v1030
        %v1093 = vadd.f32 %v938, %v1034
        %v1094 = vadd.f32 %v939, %v1033
        %v1095 = vadd.f32 %v940, %v1037
        %v1096 = vadd.f32 %v941, %v1036
        %v1097 = vadd.f32 %v942, %v1040
        %v1098 = vadd.f32 %v943, %v1039
        %v1099 = vadd.f32 %v944, %v1043
        %v1100 = vadd.f32 %v945, %v1042
        %v1101 = vadd.f32 %v946, %v1046
        %v1102 = vadd.f32 %v947, %v1045
        %s1103 = sadd.s32 %s305, 2
        %s1104 = smul.u32 %s1103, 16
        %s1105 = scalar_lea.vmem %s251, %s1104 [#allocation2]
        %v1106 = vld [vmem:[%s1105] sm:$0xff]
        %v1107 = vld [vmem:[%s1105 + $0x8] sm:$0xff]
        %v1108 = vld [vmem:[%s1105 + $0x10] sm:$0xff]
        %v1109 = vld [vmem:[%s1105 + $0x18] sm:$0xff]
        %v1110 = vld [vmem:[%s1105 + $0x20] sm:$0xff]
        %v1111 = vld [vmem:[%s1105 + $0x28] sm:$0xff]
        %v1112 = vld [vmem:[%s1105 + $0x30] sm:$0xff]
        %v1113 = vld [vmem:[%s1105 + $0x38] sm:$0xff]
        %v1114 = vld [vmem:[%s1105 + $0x40] sm:$0xff]
        %v1115 = vld [vmem:[%s1105 + $0x48] sm:$0xff]
        %v1116 = vld [vmem:[%s1105 + $0x50] sm:$0xff]
        %v1117 = vld [vmem:[%s1105 + $0x58] sm:$0xff]
        %v1118 = vld [vmem:[%s1105 + $0x60] sm:$0xff]
        %v1119 = vld [vmem:[%s1105 + $0x68] sm:$0xff]
        %v1120 = vld [vmem:[%s1105 + $0x70] sm:$0xff]
        %v1121 = vld [vmem:[%s1105 + $0x78] sm:$0xff]
        %v1122 = vld [vmem:[%s1105 + $0x80] sm:$0xff]
        %v1123 = vld [vmem:[%s1105 + $0x88] sm:$0xff]
        %v1124 = vld [vmem:[%s1105 + $0x90] sm:$0xff]
        %v1125 = vld [vmem:[%s1105 + $0x98] sm:$0xff]
        %v1126 = vld [vmem:[%s1105 + $0xa0] sm:$0xff]
        %v1127 = vld [vmem:[%s1105 + $0xa8] sm:$0xff]
        %v1128 = vld [vmem:[%s1105 + $0xb0] sm:$0xff]
        %v1129 = vld [vmem:[%s1105 + $0xb8] sm:$0xff]
        %v1130 = vld [vmem:[%s1105 + $0xc0] sm:$0xff]
        %v1131 = vld [vmem:[%s1105 + $0xc8] sm:$0xff]
        %v1132 = vld [vmem:[%s1105 + $0xd0] sm:$0xff]
        %v1133 = vld [vmem:[%s1105 + $0xd8] sm:$0xff]
        %v1134 = vperm.slane %v304, 0
        %v1135 = vmul.f32 %v1106, %v1134
        %v1136 = vmul.f32 %v1107, %v1134
        %v1137 = vmul.f32 %v1108, %v1134
        %v1138 = vmul.f32 %v1109, %v1134
        %v1139 = vmul.f32 %v1110, %v1134
        %v1140 = vmul.f32 %v1111, %v1134
        %v1141 = vmul.f32 %v1112, %v1134
        %v1142 = vmul.f32 %v1113, %v1134
        %v1143 = vmul.f32 %v1114, %v1134
        %v1144 = vmul.f32 %v1115, %v1134
        %v1145 = vmul.f32 %v1116, %v1134
        %v1146 = vmul.f32 %v1117, %v1134
        %v1147 = vmul.f32 %v1118, %v1134
        %v1148 = vmul.f32 %v1119, %v1134
        %v1149 = vmul.f32 %v1120, %v1134
        %v1150 = vmul.f32 %v1121, %v1134
        %v1151 = vmul.f32 %v1122, %v1134
        %v1152 = vmul.f32 %v1123, %v1134
        %v1153 = vmul.f32 %v1124, %v1134
        %v1154 = vmul.f32 %v1125, %v1134
        %v1155 = vmul.f32 %v1126, %v1134
        %v1156 = vmul.f32 %v1127, %v1134
        %v1157 = vmul.f32 %v1128, %v1134
        %v1158 = vmul.f32 %v1129, %v1134
        %v1159 = vmul.f32 %v1130, %v1134
        %v1160 = vmul.f32 %v1131, %v1134
        %v1161 = vmul.f32 %v1132, %v1134
        %v1162 = vmul.f32 %v1133, %v1134
        %v1163 = vadd.f32 %v1075, %v1135
        %v1164 = vadd.f32 %v1076, %v1136
        %v1165 = vadd.f32 %v1077, %v1137
        %v1166 = vadd.f32 %v1078, %v1138
        %v1167 = vadd.f32 %v1079, %v1139
        %v1168 = vadd.f32 %v1080, %v1140
        %v1169 = vadd.f32 %v1081, %v1141
        %v1170 = vadd.f32 %v1082, %v1142
        %v1171 = vadd.f32 %v1083, %v1143
        %v1172 = vadd.f32 %v1084, %v1144
        %v1173 = vadd.f32 %v1085, %v1145
        %v1174 = vadd.f32 %v1086, %v1146
        %v1175 = vadd.f32 %v1087, %v1147
        %v1176 = vadd.f32 %v1088, %v1148
        %v1177 = vadd.f32 %v1089, %v1149
        %v1178 = vadd.f32 %v1090, %v1150
        %v1179 = vadd.f32 %v1091, %v1151
        %v1180 = vadd.f32 %v1092, %v1152
        %v1181 = vadd.f32 %v1093, %v1153
        %v1182 = vadd.f32 %v1094, %v1154
        %v1183 = vadd.f32 %v1095, %v1155
        %v1184 = vadd.f32 %v1096, %v1156
        %v1185 = vadd.f32 %v1097, %v1157
        %v1186 = vadd.f32 %v1098, %v1158
        %v1187 = vadd.f32 %v1099, %v1159
        %v1188 = vadd.f32 %v1100, %v1160
        %v1189 = vadd.f32 %v1101, %v1161
        %v1190 = vadd.f32 %v1102, %v1162
        %v1191 = vperm.slane %v304, 1
        %v1192 = vmul.f32 %v1106, %v1191
        %v1193 = vmul.f32 %v1107, %v1191
        %v1194 = vmul.f32 %v1108, %v1191
        %v1195 = vmul.f32 %v1109, %v1191
        %v1196 = vmul.f32 %v1110, %v1191
        %v1197 = vmul.f32 %v1111, %v1191
        %v1198 = vmul.f32 %v1112, %v1191
        %v1199 = vmul.f32 %v1113, %v1191
        %v1200 = vmul.f32 %v1114, %v1191
        %v1201 = vmul.f32 %v1115, %v1191
        %v1202 = vmul.f32 %v1116, %v1191
        %v1203 = vmul.f32 %v1117, %v1191
        %v1204 = vmul.f32 %v1118, %v1191
        %v1205 = vmul.f32 %v1119, %v1191
        %v1206 = vmul.f32 %v1120, %v1191
        %v1207 = vmul.f32 %v1121, %v1191
        %v1208 = vmul.f32 %v1122, %v1191
        %v1209 = vmul.f32 %v1123, %v1191
        %v1210 = vmul.f32 %v1124, %v1191
        %v1211 = vmul.f32 %v1125, %v1191
        %v1212 = vmul.f32 %v1126, %v1191
        %v1213 = vmul.f32 %v1127, %v1191
        %v1214 = vmul.f32 %v1128, %v1191
        %v1215 = vmul.f32 %v1129, %v1191
        %v1216 = vmul.f32 %v1130, %v1191
        %v1217 = vmul.f32 %v1131, %v1191
        %v1218 = vmul.f32 %v1132, %v1191
        %v1219 = vmul.f32 %v1133, %v1191
        %v1248 = vrot.slane %v1192, 1
        %v1249 = vrot.slane %v1193, 1
        %v1250 = vsel %vm450, %v1248, %v1249
        %v1251 = vrot.slane %v1194, 1
        %v1252 = vrot.slane %v1195, 1
        %v1253 = vsel %vm450, %v1251, %v1252
        %v1254 = vrot.slane %v1196, 1
        %v1255 = vrot.slane %v1197, 1
        %v1256 = vsel %vm450, %v1254, %v1255
        %v1257 = vrot.slane %v1198, 1
        %v1258 = vrot.slane %v1199, 1
        %v1259 = vsel %vm450, %v1257, %v1258
        %v1260 = vrot.slane %v1200, 1
        %v1261 = vrot.slane %v1201, 1
        %v1262 = vsel %vm450, %v1260, %v1261
        %v1263 = vrot.slane %v1202, 1
        %v1264 = vrot.slane %v1203, 1
        %v1265 = vsel %vm450, %v1263, %v1264
        %v1266 = vrot.slane %v1204, 1
        %v1267 = vrot.slane %v1205, 1
        %v1268 = vsel %vm450, %v1266, %v1267
        %v1269 = vrot.slane %v1206, 1
        %v1270 = vrot.slane %v1207, 1
        %v1271 = vsel %vm450, %v1269, %v1270
        %v1272 = vrot.slane %v1208, 1
        %v1273 = vrot.slane %v1209, 1
        %v1274 = vsel %vm450, %v1272, %v1273
        %v1275 = vrot.slane %v1210, 1
        %v1276 = vrot.slane %v1211, 1
        %v1277 = vsel %vm450, %v1275, %v1276
        %v1278 = vrot.slane %v1212, 1
        %v1279 = vrot.slane %v1213, 1
        %v1280 = vsel %vm450, %v1278, %v1279
        %v1281 = vrot.slane %v1214, 1
        %v1282 = vrot.slane %v1215, 1
        %v1283 = vsel %vm450, %v1281, %v1282
        %v1284 = vrot.slane %v1216, 1
        %v1285 = vrot.slane %v1217, 1
        %v1286 = vsel %vm450, %v1284, %v1285
        %v1287 = vrot.slane %v1218, 1
        %v1288 = vrot.slane %v1219, 1
        %v1289 = vsel %vm450, %v1287, %v1288
        %v1318 = vadd.f32 %v1163, %v1250
        %v1319 = vadd.f32 %v1164, %v1249
        %v1320 = vadd.f32 %v1165, %v1253
        %v1321 = vadd.f32 %v1166, %v1252
        %v1322 = vadd.f32 %v1167, %v1256
        %v1323 = vadd.f32 %v1168, %v1255
        %v1324 = vadd.f32 %v1169, %v1259
        %v1325 = vadd.f32 %v1170, %v1258
        %v1326 = vadd.f32 %v1171, %v1262
        %v1327 = vadd.f32 %v1172, %v1261
        %v1328 = vadd.f32 %v1173, %v1265
        %v1329 = vadd.f32 %v1174, %v1264
        %v1330 = vadd.f32 %v1175, %v1268
        %v1331 = vadd.f32 %v1176, %v1267
        %v1332 = vadd.f32 %v1177, %v1271
        %v1333 = vadd.f32 %v1178, %v1270
        %v1334 = vadd.f32 %v1179, %v1274
        %v1335 = vadd.f32 %v1180, %v1273
        %v1336 = vadd.f32 %v1181, %v1277
        %v1337 = vadd.f32 %v1182, %v1276
        %v1338 = vadd.f32 %v1183, %v1280
        %v1339 = vadd.f32 %v1184, %v1279
        %v1340 = vadd.f32 %v1185, %v1283
        %v1341 = vadd.f32 %v1186, %v1282
        %v1342 = vadd.f32 %v1187, %v1286
        %v1343 = vadd.f32 %v1188, %v1285
        %v1344 = vadd.f32 %v1189, %v1289
        %v1345 = vadd.f32 %v1190, %v1288
        %v1346 = vperm.slane %v304, 2
        %v1347 = vmul.f32 %v1106, %v1346
        %v1348 = vmul.f32 %v1107, %v1346
        %v1349 = vmul.f32 %v1108, %v1346
        %v1350 = vmul.f32 %v1109, %v1346
        %v1351 = vmul.f32 %v1110, %v1346
        %v1352 = vmul.f32 %v1111, %v1346
        %v1353 = vmul.f32 %v1112, %v1346
        %v1354 = vmul.f32 %v1113, %v1346
        %v1355 = vmul.f32 %v1114, %v1346
        %v1356 = vmul.f32 %v1115, %v1346
        %v1357 = vmul.f32 %v1116, %v1346
        %v1358 = vmul.f32 %v1117, %v1346
        %v1359 = vmul.f32 %v1118, %v1346
        %v1360 = vmul.f32 %v1119, %v1346
        %v1361 = vmul.f32 %v1120, %v1346
        %v1362 = vmul.f32 %v1121, %v1346
        %v1363 = vmul.f32 %v1122, %v1346
        %v1364 = vmul.f32 %v1123, %v1346
        %v1365 = vmul.f32 %v1124, %v1346
        %v1366 = vmul.f32 %v1125, %v1346
        %v1367 = vmul.f32 %v1126, %v1346
        %v1368 = vmul.f32 %v1127, %v1346
        %v1369 = vmul.f32 %v1128, %v1346
        %v1370 = vmul.f32 %v1129, %v1346
        %v1371 = vmul.f32 %v1130, %v1346
        %v1372 = vmul.f32 %v1131, %v1346
        %v1373 = vmul.f32 %v1132, %v1346
        %v1374 = vmul.f32 %v1133, %v1346
        %v1403 = vrot.slane %v1347, 2
        %v1404 = vrot.slane %v1348, 2
        %v1405 = vsel %vm606, %v1403, %v1404
        %v1406 = vrot.slane %v1349, 2
        %v1407 = vrot.slane %v1350, 2
        %v1408 = vsel %vm606, %v1406, %v1407
        %v1409 = vrot.slane %v1351, 2
        %v1410 = vrot.slane %v1352, 2
        %v1411 = vsel %vm606, %v1409, %v1410
        %v1412 = vrot.slane %v1353, 2
        %v1413 = vrot.slane %v1354, 2
        %v1414 = vsel %vm606, %v1412, %v1413
        %v1415 = vrot.slane %v1355, 2
        %v1416 = vrot.slane %v1356, 2
        %v1417 = vsel %vm606, %v1415, %v1416
        %v1418 = vrot.slane %v1357, 2
        %v1419 = vrot.slane %v1358, 2
        %v1420 = vsel %vm606, %v1418, %v1419
        %v1421 = vrot.slane %v1359, 2
        %v1422 = vrot.slane %v1360, 2
        %v1423 = vsel %vm606, %v1421, %v1422
        %v1424 = vrot.slane %v1361, 2
        %v1425 = vrot.slane %v1362, 2
        %v1426 = vsel %vm606, %v1424, %v1425
        %v1427 = vrot.slane %v1363, 2
        %v1428 = vrot.slane %v1364, 2
        %v1429 = vsel %vm606, %v1427, %v1428
        %v1430 = vrot.slane %v1365, 2
        %v1431 = vrot.slane %v1366, 2
        %v1432 = vsel %vm606, %v1430, %v1431
        %v1433 = vrot.slane %v1367, 2
        %v1434 = vrot.slane %v1368, 2
        %v1435 = vsel %vm606, %v1433, %v1434
        %v1436 = vrot.slane %v1369, 2
        %v1437 = vrot.slane %v1370, 2
        %v1438 = vsel %vm606, %v1436, %v1437
        %v1439 = vrot.slane %v1371, 2
        %v1440 = vrot.slane %v1372, 2
        %v1441 = vsel %vm606, %v1439, %v1440
        %v1442 = vrot.slane %v1373, 2
        %v1443 = vrot.slane %v1374, 2
        %v1444 = vsel %vm606, %v1442, %v1443
        %v1473 = vadd.f32 %v1318, %v1405
        %v1474 = vadd.f32 %v1319, %v1404
        %v1475 = vadd.f32 %v1320, %v1408
        %v1476 = vadd.f32 %v1321, %v1407
        %v1477 = vadd.f32 %v1322, %v1411
        %v1478 = vadd.f32 %v1323, %v1410
        %v1479 = vadd.f32 %v1324, %v1414
        %v1480 = vadd.f32 %v1325, %v1413
        %v1481 = vadd.f32 %v1326, %v1417
        %v1482 = vadd.f32 %v1327, %v1416
        %v1483 = vadd.f32 %v1328, %v1420
        %v1484 = vadd.f32 %v1329, %v1419
        %v1485 = vadd.f32 %v1330, %v1423
        %v1486 = vadd.f32 %v1331, %v1422
        %v1487 = vadd.f32 %v1332, %v1426
        %v1488 = vadd.f32 %v1333, %v1425
        %v1489 = vadd.f32 %v1334, %v1429
        %v1490 = vadd.f32 %v1335, %v1428
        %v1491 = vadd.f32 %v1336, %v1432
        %v1492 = vadd.f32 %v1337, %v1431
        %v1493 = vadd.f32 %v1338, %v1435
        %v1494 = vadd.f32 %v1339, %v1434
        %v1495 = vadd.f32 %v1340, %v1438
        %v1496 = vadd.f32 %v1341, %v1437
        %v1497 = vadd.f32 %v1342, %v1441
        %v1498 = vadd.f32 %v1343, %v1440
        %v1499 = vadd.f32 %v1344, %v1444
        %v1500 = vadd.f32 %v1345, %v1443
        %v1501 = vld [vmem:[%s2] sm:$0x1]
        %v1503 = vperm.slane %v1501, 0
        %v1505 = vadd.f32 %v1473, %v1503
        %v1506 = vadd.f32 %v1474, %v1503
        %v1507 = vadd.f32 %v1475, %v1503
        %v1508 = vadd.f32 %v1476, %v1503
        %v1509 = vadd.f32 %v1477, %v1503
        %v1510 = vadd.f32 %v1478, %v1503
        %v1511 = vadd.f32 %v1479, %v1503
        %v1512 = vadd.f32 %v1480, %v1503
        %v1513 = vadd.f32 %v1481, %v1503
        %v1514 = vadd.f32 %v1482, %v1503
        %v1515 = vadd.f32 %v1483, %v1503
        %v1516 = vadd.f32 %v1484, %v1503
        %v1517 = vadd.f32 %v1485, %v1503
        %v1518 = vadd.f32 %v1486, %v1503
        %v1519 = vadd.f32 %v1487, %v1503
        %v1520 = vadd.f32 %v1488, %v1503
        %v1521 = vadd.f32 %v1489, %v1503
        %v1522 = vadd.f32 %v1490, %v1503
        %v1523 = vadd.f32 %v1491, %v1503
        %v1524 = vadd.f32 %v1492, %v1503
        %v1525 = vadd.f32 %v1493, %v1503
        %v1526 = vadd.f32 %v1494, %v1503
        %v1527 = vadd.f32 %v1495, %v1503
        %v1528 = vadd.f32 %v1496, %v1503
        %v1529 = vadd.f32 %v1497, %v1503
        %v1530 = vadd.f32 %v1498, %v1503
        %v1531 = vadd.f32 %v1499, %v1503
        %v1532 = vadd.f32 %v1500, %v1503
        %v1533 = vmax.f32 %v1505, 0.0
        %v1534 = vmax.f32 %v1506, 0.0
        %v1535 = vmax.f32 %v1507, 0.0
        %v1536 = vmax.f32 %v1508, 0.0
        %v1537 = vmax.f32 %v1509, 0.0
        %v1538 = vmax.f32 %v1510, 0.0
        %v1539 = vmax.f32 %v1511, 0.0
        %v1540 = vmax.f32 %v1512, 0.0
        %v1541 = vmax.f32 %v1513, 0.0
        %v1542 = vmax.f32 %v1514, 0.0
        %v1543 = vmax.f32 %v1515, 0.0
        %v1544 = vmax.f32 %v1516, 0.0
        %v1545 = vmax.f32 %v1517, 0.0
        %v1546 = vmax.f32 %v1518, 0.0
        %v1547 = vmax.f32 %v1519, 0.0
        %v1548 = vmax.f32 %v1520, 0.0
        %v1549 = vmax.f32 %v1521, 0.0
        %v1550 = vmax.f32 %v1522, 0.0
        %v1551 = vmax.f32 %v1523, 0.0
        %v1552 = vmax.f32 %v1524, 0.0
        %v1553 = vmax.f32 %v1525, 0.0
        %v1554 = vmax.f32 %v1526, 0.0
        %v1555 = vmax.f32 %v1527, 0.0
        %v1556 = vmax.f32 %v1528, 0.0
        %v1557 = vmax.f32 %v1529, 0.0
        %v1558 = vmax.f32 %v1530, 0.0
        %v1559 = vmax.f32 %v1531, 0.0
        %v1560 = vmax.f32 %v1532, 0.0
        %v1589 = vrot.slane %v1533, 2
        %v1590 = vrot.slane %v1533, 4
        %v1591 = vrot.slane %v1533, 6
        %v1592 = vrot.slane %v1534, 2
        %v1593 = vrot.slane %v1534, 4
        %v1594 = vrot.slane %v1535, 2
        %v1595 = vrot.slane %v1535, 4
        %v1596 = vrot.slane %v1535, 6
        %v1597 = vrot.slane %v1536, 2
        %v1598 = vrot.slane %v1536, 4
        %v1599 = vrot.slane %v1537, 2
        %v1600 = vrot.slane %v1537, 4
        %v1601 = vrot.slane %v1537, 6
        %v1602 = vrot.slane %v1538, 2
        %v1603 = vrot.slane %v1538, 4
        %v1604 = vrot.slane %v1539, 2
        %v1605 = vrot.slane %v1539, 4
        %v1606 = vrot.slane %v1539, 6
        %v1607 = vrot.slane %v1540, 2
        %v1608 = vrot.slane %v1540, 4
        %v1609 = vrot.slane %v1541, 2
        %v1610 = vrot.slane %v1541, 4
        %v1611 = vrot.slane %v1541, 6
        %v1612 = vrot.slane %v1542, 2
        %v1613 = vrot.slane %v1542, 4
        %v1614 = vrot.slane %v1543, 2
        %v1615 = vrot.slane %v1543, 4
        %v1616 = vrot.slane %v1543, 6
        %v1617 = vrot.slane %v1544, 2
        %v1618 = vrot.slane %v1544, 4
        %v1619 = vrot.slane %v1545, 2
        %v1620 = vrot.slane %v1545, 4
        %v1621 = vrot.slane %v1545, 6
        %v1622 = vrot.slane %v1546, 2
        %v1623 = vrot.slane %v1546, 4
        %v1624 = vrot.slane %v1547, 2
        %v1625 = vrot.slane %v1547, 4
        %v1626 = vrot.slane %v1547, 6
        %v1627 = vrot.slane %v1548, 2
        %v1628 = vrot.slane %v1548, 4
        %v1629 = vrot.slane %v1549, 2
        %v1630 = vrot.slane %v1549, 4
        %v1631 = vrot.slane %v1549, 6
        %v1632 = vrot.slane %v1550, 2
        %v1633 = vrot.slane %v1550, 4
        %v1634 = vrot.slane %v1551, 2
        %v1635 = vrot.slane %v1551, 4
        %v1636 = vrot.slane %v1551, 6
        %v1637 = vrot.slane %v1552, 2
        %v1638 = vrot.slane %v1552, 4
        %v1639 = vrot.slane %v1553, 2
        %v1640 = vrot.slane %v1553, 4
        %v1641 = vrot.slane %v1553, 6
        %v1642 = vrot.slane %v1554, 2
        %v1643 = vrot.slane %v1554, 4
        %v1644 = vrot.slane %v1555, 2
        %v1645 = vrot.slane %v1555, 4
        %v1646 = vrot.slane %v1555, 6
        %v1647 = vrot.slane %v1556, 2
        %v1648 = vrot.slane %v1556, 4
        %v1649 = vrot.slane %v1557, 2
        %v1650 = vrot.slane %v1557, 4
        %v1651 = vrot.slane %v1557, 6
        %v1652 = vrot.slane %v1558, 2
        %v1653 = vrot.slane %v1558, 4
        %v1654 = vrot.slane %v1559, 2
        %v1655 = vrot.slane %v1559, 4
        %v1656 = vrot.slane %v1559, 6
        %v1657 = vrot.slane %v1560, 2
        %v1658 = vrot.slane %v1560, 4
        %1659 = vst [vmem:[#allocation1] ss:$4 sm:$0xff] %v1533
        %s1660 = scalar_lea.vmem [#allocation1], 1
        %1661 = vst [vmem:[%s1660] ss:$4 sm:$0xff] %v1589
        %s1662 = scalar_lea.vmem [#allocation1], 2
        %1663 = vst [vmem:[%s1662] ss:$4 sm:$0xff] %v1590
        %s1664 = scalar_lea.vmem [#allocation1], 3
        %1665 = vst [vmem:[%s1664] ss:$4 sm:$0xff] %v1591
        %s1666 = scalar_lea.vmem [#allocation1], 32
        %1667 = vst [vmem:[%s1666] ss:$4 sm:$0xff] %v1534
        %s1668 = scalar_lea.vmem [#allocation1], 33
        %1669 = vst [vmem:[%s1668] ss:$4 sm:$0xff] %v1592
        %s1670 = scalar_lea.vmem [#allocation1], 34
        %1671 = vst [vmem:[%s1670] ss:$4 sm:$0xff] %v1593
        %s1672 = scalar_lea.vmem [#allocation1], 35
        %1673 = vst [vmem:[%s1672] ss:$4 sm:$0xff] %v1535
        %v1674 = vld.sshfl [vmem:[#allocation1] sm:$0xff pattern:$0x73625140]
        %v1675 = vld.sshfl [vmem:[#allocation1 + $0x20] sm:$0xff pattern:$0x73625140]
        %1676 = vst [vmem:[#allocation1] ss:$4 sm:$0xff] %v1594
        %1677 = vst [vmem:[%s1660] ss:$4 sm:$0xff] %v1595
        %1678 = vst [vmem:[%s1662] ss:$4 sm:$0xff] %v1596
        %1679 = vst [vmem:[%s1664] ss:$4 sm:$0xff] %v1536
        %1680 = vst [vmem:[%s1666] ss:$4 sm:$0xff] %v1597
        %1681 = vst [vmem:[%s1668] ss:$4 sm:$0xff] %v1598
        %1682 = vst [vmem:[%s1670] ss:$4 sm:$0xff] %v1537
        %1683 = vst [vmem:[%s1672] ss:$4 sm:$0xff] %v1599
        %v1684 = vld.sshfl [vmem:[#allocation1] sm:$0xff pattern:$0x73625140]
        %v1685 = vld.sshfl [vmem:[#allocation1 + $0x20] sm:$0xff pattern:$0x73625140]
        %1686 = vst [vmem:[#allocation1] ss:$4 sm:$0xff] %v1600
        %1687 = vst [vmem:[%s1660] ss:$4 sm:$0xff] %v1601
        %1688 = vst [vmem:[%s1662] ss:$4 sm:$0xff] %v1538
        %1689 = vst [vmem:[%s1664] ss:$4 sm:$0xff] %v1602
        %1690 = vst [vmem:[%s1666] ss:$4 sm:$0xff] %v1603
        %1691 = vst [vmem:[%s1668] ss:$4 sm:$0xff] %v1539
        %1692 = vst [vmem:[%s1670] ss:$4 sm:$0xff] %v1604
        %1693 = vst [vmem:[%s1672] ss:$4 sm:$0xff] %v1605
        %v1694 = vld.sshfl [vmem:[#allocation1] sm:$0xff pattern:$0x73625140]
        %v1695 = vld.sshfl [vmem:[#allocation1 + $0x20] sm:$0xff pattern:$0x73625140]
        %1696 = vst [vmem:[#allocation1] ss:$4 sm:$0xff] %v1606
        %1697 = vst [vmem:[%s1660] ss:$4 sm:$0xff] %v1540
        %1698 = vst [vmem:[%s1662] ss:$4 sm:$0xff] %v1607
        %1699 = vst [vmem:[%s1664] ss:$4 sm:$0xff] %v1608
        %1700 = vst [vmem:[%s1666] ss:$4 sm:$0xff] %v1541
        %1701 = vst [vmem:[%s1668] ss:$4 sm:$0xff] %v1609
        %1702 = vst [vmem:[%s1670] ss:$4 sm:$0xff] %v1610
        %1703 = vst [vmem:[%s1672] ss:$4 sm:$0xff] %v1611
        %v1704 = vld.sshfl [vmem:[#allocation1] sm:$0xff pattern:$0x73625140]
        %v1705 = vld.sshfl [vmem:[#allocation1 + $0x20] sm:$0xff pattern:$0x73625140]
        %1706 = vst [vmem:[#allocation1] ss:$4 sm:$0xff] %v1542
        %1707 = vst [vmem:[%s1660] ss:$4 sm:$0xff] %v1612
        %1708 = vst [vmem:[%s1662] ss:$4 sm:$0xff] %v1613
        %1709 = vst [vmem:[%s1664] ss:$4 sm:$0xff] %v1543
        %1710 = vst [vmem:[%s1666] ss:$4 sm:$0xff] %v1614
        %1711 = vst [vmem:[%s1668] ss:$4 sm:$0xff] %v1615
        %1712 = vst [vmem:[%s1670] ss:$4 sm:$0xff] %v1616
        %1713 = vst [vmem:[%s1672] ss:$4 sm:$0xff] %v1544
        %v1714 = vld.sshfl [vmem:[#allocation1] sm:$0xff pattern:$0x73625140]
        %v1715 = vld.sshfl [vmem:[#allocation1 + $0x20] sm:$0xff pattern:$0x73625140]
        %1716 = vst [vmem:[#allocation1] ss:$4 sm:$0xff] %v1617
        %1717 = vst [vmem:[%s1660] ss:$4 sm:$0xff] %v1618
        %1718 = vst [vmem:[%s1662] ss:$4 sm:$0xff] %v1545
        %1719 = vst [vmem:[%s1664] ss:$4 sm:$0xff] %v1619
        %1720 = vst [vmem:[%s1666] ss:$4 sm:$0xff] %v1620
        %1721 = vst [vmem:[%s1668] ss:$4 sm:$0xff] %v1621
        %1722 = vst [vmem:[%s1670] ss:$4 sm:$0xff] %v1546
        %1723 = vst [vmem:[%s1672] ss:$4 sm:$0xff] %v1622
        %v1724 = vld.sshfl [vmem:[#allocation1] sm:$0xff pattern:$0x73625140]
        %v1725 = vld.sshfl [vmem:[#allocation1 + $0x20] sm:$0xff pattern:$0x73625140]
        %1726 = vst [vmem:[#allocation1] ss:$4 sm:$0xff] %v1623
        %1727 = vst [vmem:[%s1660] ss:$4 sm:$0xff] %v1547
        %1728 = vst [vmem:[%s1662] ss:$4 sm:$0xff] %v1624
        %1729 = vst [vmem:[%s1664] ss:$4 sm:$0xff] %v1625
        %1730 = vst [vmem:[%s1666] ss:$4 sm:$0xff] %v1626
        %1731 = vst [vmem:[%s1668] ss:$4 sm:$0xff] %v1548
        %1732 = vst [vmem:[%s1670] ss:$4 sm:$0xff] %v1627
        %1733 = vst [vmem:[%s1672] ss:$4 sm:$0xff] %v1628
        %v1734 = vld.sshfl [vmem:[#allocation1] sm:$0xff pattern:$0x73625140]
        %v1735 = vld.sshfl [vmem:[#allocation1 + $0x20] sm:$0xff pattern:$0x73625140]
        %1736 = vst [vmem:[#allocation1] ss:$4 sm:$0xff] %v1549
        %1737 = vst [vmem:[%s1660] ss:$4 sm:$0xff] %v1629
        %1738 = vst [vmem:[%s1662] ss:$4 sm:$0xff] %v1630
        %1739 = vst [vmem:[%s1664] ss:$4 sm:$0xff] %v1631
        %1740 = vst [vmem:[%s1666] ss:$4 sm:$0xff] %v1550
        %1741 = vst [vmem:[%s1668] ss:$4 sm:$0xff] %v1632
        %1742 = vst [vmem:[%s1670] ss:$4 sm:$0xff] %v1633
        %1743 = vst [vmem:[%s1672] ss:$4 sm:$0xff] %v1551
        %v1744 = vld.sshfl [vmem:[#allocation1] sm:$0xff pattern:$0x73625140]
        %v1745 = vld.sshfl [vmem:[#allocation1 + $0x20] sm:$0xff pattern:$0x73625140]
        %1746 = vst [vmem:[#allocation1] ss:$4 sm:$0xff] %v1634
        %1747 = vst [vmem:[%s1660] ss:$4 sm:$0xff] %v1635
        %1748 = vst [vmem:[%s1662] ss:$4 sm:$0xff] %v1636
        %1749 = vst [vmem:[%s1664] ss:$4 sm:$0xff] %v1552
        %1750 = vst [vmem:[%s1666] ss:$4 sm:$0xff] %v1637
        %1751 = vst [vmem:[%s1668] ss:$4 sm:$0xff] %v1638
        %1752 = vst [vmem:[%s1670] ss:$4 sm:$0xff] %v1553
        %1753 = vst [vmem:[%s1672] ss:$4 sm:$0xff] %v1639
        %v1754 = vld.sshfl [vmem:[#allocation1] sm:$0xff pattern:$0x73625140]
        %v1755 = vld.sshfl [vmem:[#allocation1 + $0x20] sm:$0xff pattern:$0x73625140]
        %1756 = vst [vmem:[#allocation1] ss:$4 sm:$0xff] %v1640
        %1757 = vst [vmem:[%s1660] ss:$4 sm:$0xff] %v1641
        %1758 = vst [vmem:[%s1662] ss:$4 sm:$0xff] %v1554
        %1759 = vst [vmem:[%s1664] ss:$4 sm:$0xff] %v1642
        %1760 = vst [vmem:[%s1666] ss:$4 sm:$0xff] %v1643
        %1761 = vst [vmem:[%s1668] ss:$4 sm:$0xff] %v1555
        %1762 = vst [vmem:[%s1670] ss:$4 sm:$0xff] %v1644
        %1763 = vst [vmem:[%s1672] ss:$4 sm:$0xff] %v1645
        %v1764 = vld.sshfl [vmem:[#allocation1] sm:$0xff pattern:$0x73625140]
        %v1765 = vld.sshfl [vmem:[#allocation1 + $0x20] sm:$0xff pattern:$0x73625140]
        %1766 = vst [vmem:[#allocation1] ss:$4 sm:$0xff] %v1646
        %1767 = vst [vmem:[%s1660] ss:$4 sm:$0xff] %v1556
        %1768 = vst [vmem:[%s1662] ss:$4 sm:$0xff] %v1647
        %1769 = vst [vmem:[%s1664] ss:$4 sm:$0xff] %v1648
        %1770 = vst [vmem:[%s1666] ss:$4 sm:$0xff] %v1557
        %1771 = vst [vmem:[%s1668] ss:$4 sm:$0xff] %v1649
        %1772 = vst [vmem:[%s1670] ss:$4 sm:$0xff] %v1650
        %1773 = vst [vmem:[%s1672] ss:$4 sm:$0xff] %v1651
        %v1774 = vld.sshfl [vmem:[#allocation1] sm:$0xff pattern:$0x73625140]
        %v1775 = vld.sshfl [vmem:[#allocation1 + $0x20] sm:$0xff pattern:$0x73625140]
        %1776 = vst [vmem:[#allocation1] ss:$4 sm:$0xff] %v1558
        %1777 = vst [vmem:[%s1660] ss:$4 sm:$0xff] %v1652
        %1778 = vst [vmem:[%s1662] ss:$4 sm:$0xff] %v1653
        %1779 = vst [vmem:[%s1664] ss:$4 sm:$0xff] %v1559
        %1780 = vst [vmem:[%s1666] ss:$4 sm:$0xff] %v1654
        %1781 = vst [vmem:[%s1668] ss:$4 sm:$0xff] %v1655
        %1782 = vst [vmem:[%s1670] ss:$4 sm:$0xff] %v1656
        %1783 = vst [vmem:[%s1672] ss:$4 sm:$0xff] %v1560
        %v1784 = vld.sshfl [vmem:[#allocation1] sm:$0xff pattern:$0x73625140]
        %v1785 = vld.sshfl [vmem:[#allocation1 + $0x20] sm:$0xff pattern:$0x73625140]
        %1786 = vst [vmem:[#allocation1] ss:$4 sm:$0xff] %v1657
        %1787 = vst [vmem:[%s1660] ss:$4 sm:$0xff] %v1658
        %v1788 = vld.sshfl [vmem:[#allocation1] sm:$0xff pattern:$0x73625140]
        %v1814 = vpack.c.bf16 %v1675, %v1674
        %v1815 = vpack.c.bf16 %v1685, %v1684
        %v1816 = vpack.c.bf16 %v1695, %v1694
        %v1817 = vpack.c.bf16 %v1705, %v1704
        %v1818 = vpack.c.bf16 %v1715, %v1714
        %v1819 = vpack.c.bf16 %v1725, %v1724
        %v1820 = vpack.c.bf16 %v1735, %v1734
        %v1821 = vpack.c.bf16 %v1745, %v1744
        %v1822 = vpack.c.bf16 %v1755, %v1754
        %v1823 = vpack.c.bf16 %v1765, %v1764
        %v1824 = vpack.c.bf16 %v1775, %v1774
        %v1825 = vpack.c.bf16 %v1785, %v1784
        %v1826 = vpack.c.bf16 %v1788, %v1788
        %v1827 = vld [vmem:[#allocation6] sm:$0xf]
        %v1828 = vld [vmem:[#allocation6 + $0x4] sm:$0xf]
        %v1829 = vld [vmem:[#allocation6 + $0x8] sm:$0xf]
        %v1830 = vld [vmem:[#allocation6 + $0xc] sm:$0xf]
        %v1831 = vld [vmem:[#allocation6 + $0x10] sm:$0xf]
        %v1832 = vld [vmem:[#allocation6 + $0x14] sm:$0xf]
        %v1833 = vld [vmem:[#allocation6 + $0x18] sm:$0xf]
        %v1834 = vld [vmem:[#allocation6 + $0x1c] sm:$0xf]
        %v1835 = vld [vmem:[#allocation6 + $0x20] sm:$0xf]
        %v1836 = vld [vmem:[#allocation6 + $0x24] sm:$0xf]
        %v1837 = vld [vmem:[#allocation6 + $0x28] sm:$0xf]
        %v1838 = vld [vmem:[#allocation6 + $0x2c] sm:$0xf]
        %v1839 = vld [vmem:[#allocation6 + $0x30] sm:$0xf]
        %v1840 = vld [vmem:[#allocation6 + $0x34] sm:$0xf]
        %v1841 = vld [vmem:[#allocation6 + $0x38] sm:$0xf]
        %v1842 = vld [vmem:[#allocation6 + $0x3c] sm:$0xf]
        %v1843 = vld [vmem:[%s4] sm:$0x1]
        %v1845 = vperm.slane %v1843, 0
        %v1863 = vunpack.c.l.b16 %v1827
        %v1864 = vunpack.c.l.b16 %v1828
        %v1865 = vunpack.c.l.b16 %v1829
        %v1866 = vunpack.c.l.b16 %v1830
        %v1867 = vunpack.c.l.b16 %v1831
        %v1868 = vunpack.c.l.b16 %v1832
        %v1869 = vunpack.c.l.b16 %v1833
        %v1870 = vunpack.c.l.b16 %v1834
        %v1871 = vunpack.c.l.b16 %v1835
        %v1872 = vunpack.c.l.b16 %v1836
        %v1873 = vunpack.c.l.b16 %v1837
        %v1874 = vunpack.c.l.b16 %v1838
        %v1875 = vunpack.c.l.b16 %v1839
        %v1876 = vunpack.c.l.b16 %v1840
        %v1877 = vunpack.c.l.b16 %v1841
        %v1878 = vunpack.c.l.b16 %v1842
        %v1879 = vpack.c.b16 %v1864, %v1863
        %v1880 = vpack.c.b16 %v1866, %v1865
        %v1881 = vpack.c.b16 %v1868, %v1867
        %v1882 = vpack.c.b16 %v1870, %v1869
        %v1883 = vpack.c.b16 %v1872, %v1871
        %v1884 = vpack.c.b16 %v1874, %v1873
        %v1885 = vpack.c.b16 %v1876, %v1875
        %v1886 = vpack.c.b16 %v1878, %v1877
        %1895 = vmatpush.bf16.msra.mxu0 %v1886
        %1896 = vmatpush.bf16.msra.mxu0 %v1885
        %1897 = vmatpush.bf16.msra.mxu0 %v1884
        %1898 = vmatpush.bf16.msra.mxu0 %v1883
        %1899 = vmatpush.bf16.msra.mxu0 %v1882
        %1900 = vmatpush.bf16.msra.mxu0 %v1881
        %1901 = vmatpush.bf16.msra.mxu0 %v1880
        %1902 = vmatpush.bf16.msra.mxu0 %v1879
        %1903 = vmatmul.bf16.gmra.mxu0 %v1814
        %v1904 = vpop.f32.mrf.mxu0
        %v1905 = vadd.f32 %v1845, %v1904
        %v1906 = vpop.f32.mrf.mxu0
        %v1907 = vadd.f32 %v1845, %v1906
        %1908 = vmatmul.bf16.gmra.mxu0 %v1815
        %v1909 = vpop.f32.mrf.mxu0
        %v1910 = vadd.f32 %v1845, %v1909
        %v1911 = vpop.f32.mrf.mxu0
        %v1912 = vadd.f32 %v1845, %v1911
        %1913 = vmatmul.bf16.gmra.mxu0 %v1816
        %v1914 = vpop.f32.mrf.mxu0
        %v1915 = vadd.f32 %v1845, %v1914
        %v1916 = vpop.f32.mrf.mxu0
        %v1917 = vadd.f32 %v1845, %v1916
        %1918 = vmatmul.bf16.gmra.mxu0 %v1817
        %v1919 = vpop.f32.mrf.mxu0
        %v1920 = vadd.f32 %v1845, %v1919
        %v1921 = vpop.f32.mrf.mxu0
        %v1922 = vadd.f32 %v1845, %v1921
        %1923 = vmatmul.bf16.gmra.mxu0 %v1818
        %v1924 = vpop.f32.mrf.mxu0
        %v1925 = vadd.f32 %v1845, %v1924
        %v1926 = vpop.f32.mrf.mxu0
        %v1927 = vadd.f32 %v1845, %v1926
        %1928 = vmatmul.bf16.gmra.mxu0 %v1819
        %v1929 = vpop.f32.mrf.mxu0
        %v1930 = vadd.f32 %v1845, %v1929
        %v1931 = vpop.f32.mrf.mxu0
        %v1932 = vadd.f32 %v1845, %v1931
        %1933 = vmatmul.bf16.gmra.mxu0 %v1820
        %v1934 = vpop.f32.mrf.mxu0
        %v1935 = vadd.f32 %v1845, %v1934
        %v1936 = vpop.f32.mrf.mxu0
        %v1937 = vadd.f32 %v1845, %v1936
        %1938 = vmatmul.bf16.gmra.mxu0 %v1821
        %v1939 = vpop.f32.mrf.mxu0
        %v1940 = vadd.f32 %v1845, %v1939
        %v1941 = vpop.f32.mrf.mxu0
        %v1942 = vadd.f32 %v1845, %v1941
        %1943 = vmatmul.bf16.gmra.mxu0 %v1822
        %v1944 = vpop.f32.mrf.mxu0
        %v1945 = vadd.f32 %v1845, %v1944
        %v1946 = vpop.f32.mrf.mxu0
        %v1947 = vadd.f32 %v1845, %v1946
        %1948 = vmatmul.bf16.gmra.mxu0 %v1823
        %v1949 = vpop.f32.mrf.mxu0
        %v1950 = vadd.f32 %v1845, %v1949
        %v1951 = vpop.f32.mrf.mxu0
        %v1952 = vadd.f32 %v1845, %v1951
        %1953 = vmatmul.bf16.gmra.mxu0 %v1824
        %v1954 = vpop.f32.mrf.mxu0
        %v1955 = vadd.f32 %v1845, %v1954
        %v1956 = vpop.f32.mrf.mxu0
        %v1957 = vadd.f32 %v1845, %v1956
        %1958 = vmatmul.bf16.gmra.mxu0 %v1825
        %v1959 = vpop.f32.mrf.mxu0
        %v1960 = vadd.f32 %v1845, %v1959
        %v1961 = vpop.f32.mrf.mxu0
        %v1962 = vadd.f32 %v1845, %v1961
        %1963 = vmatmul.bf16.gmra.mxu0 %v1826
        %v1964 = vpop.f32.mrf.mxu0
        %v1965 = vadd.f32 %v1845, %v1964
        %v1966 = vpop.f32.mrf.mxu0
        %1967 = vdwg.mxu0
        %v1968 = vmax.f32 %v1905, 0.0
        %v1969 = vmax.f32 %v1907, 0.0
        %v1970 = vmax.f32 %v1910, 0.0
        %v1971 = vmax.f32 %v1912, 0.0
        %v1972 = vmax.f32 %v1915, 0.0
        %v1973 = vmax.f32 %v1917, 0.0
        %v1974 = vmax.f32 %v1920, 0.0
        %v1975 = vmax.f32 %v1922, 0.0
        %v1976 = vmax.f32 %v1925, 0.0
        %v1977 = vmax.f32 %v1927, 0.0
        %v1978 = vmax.f32 %v1930, 0.0
        %v1979 = vmax.f32 %v1932, 0.0
        %v1980 = vmax.f32 %v1935, 0.0
        %v1981 = vmax.f32 %v1937, 0.0
        %v1982 = vmax.f32 %v1940, 0.0
        %v1983 = vmax.f32 %v1942, 0.0
        %v1984 = vmax.f32 %v1945, 0.0
        %v1985 = vmax.f32 %v1947, 0.0
        %v1986 = vmax.f32 %v1950, 0.0
        %v1987 = vmax.f32 %v1952, 0.0
        %v1988 = vmax.f32 %v1955, 0.0
        %v1989 = vmax.f32 %v1957, 0.0
        %v1990 = vmax.f32 %v1960, 0.0
        %v1991 = vmax.f32 %v1962, 0.0
        %v1992 = vmax.f32 %v1965, 0.0
        %1993 = vst [vmem:[%s301] sm:$0xff] %v1968
        %1994 = vst [vmem:[%s301 + $0x8] sm:$0xff] %v1969
        %1995 = vst [vmem:[%s301 + $0x10] sm:$0xff] %v1970
        %1996 = vst [vmem:[%s301 + $0x18] sm:$0xff] %v1971
        %1997 = vst [vmem:[%s301 + $0x20] sm:$0xff] %v1972
        %1998 = vst [vmem:[%s301 + $0x28] sm:$0xff] %v1973
        %1999 = vst [vmem:[%s301 + $0x30] sm:$0xff] %v1974
        %2000 = vst [vmem:[%s301 + $0x38] sm:$0xff] %v1975
        %2001 = vst [vmem:[%s301 + $0x40] sm:$0xff] %v1976
        %2002 = vst [vmem:[%s301 + $0x48] sm:$0xff] %v1977
        %2003 = vst [vmem:[%s301 + $0x50] sm:$0xff] %v1978
        %2004 = vst [vmem:[%s301 + $0x58] sm:$0xff] %v1979
        %2005 = vst [vmem:[%s301 + $0x60] sm:$0xff] %v1980
        %2006 = vst [vmem:[%s301 + $0x68] sm:$0xff] %v1981
        %2007 = vst [vmem:[%s301 + $0x70] sm:$0xff] %v1982
        %2008 = vst [vmem:[%s301 + $0x78] sm:$0xff] %v1983
        %2009 = vst [vmem:[%s301 + $0x80] sm:$0xff] %v1984
        %2010 = vst [vmem:[%s301 + $0x88] sm:$0xff] %v1985
        %2011 = vst [vmem:[%s301 + $0x90] sm:$0xff] %v1986
        %2012 = vst [vmem:[%s301 + $0x98] sm:$0xff] %v1987
        %2013 = vst [vmem:[%s301 + $0xa0] sm:$0xff] %v1988
        %2014 = vst [vmem:[%s301 + $0xa8] sm:$0xff] %v1989
        %2015 = vst [vmem:[%s301 + $0xb0] sm:$0xff] %v1990
        %2016 = vst [vmem:[%s301 + $0xb8] sm:$0xff] %v1991
        %2017 = vst [vmem:[%s301 + $0xc0] sm:$0xf] %v1992
        %p2018 = scmp.lt.s32.totalorder %s24, 1
        %s2019 = scalar_select %p2018, %s24, 1
        %p2020 = scmp.lt.s32.totalorder %s25, 0
        %s2021 = scalar_select %p2020, %s25, 0
        %s2022 = smul.addr %s2021, 25
        %s2023 = smul.addr %s2019, 25
        %s2024 = sadd.s32 %s2022, %s2023
        %s2025 = smul.addr %s2024, 8
        %s2026 = scalar_lea.vmem %s5, %s2025
        // Predicated region
        $region53: #{tpu_custom_call.1} parent=39 // pred_check
          %p2027 = pneg %p162
        $region54: #{tpu_custom_call.1} parent=39 // pred_check_branch
          %2029 = sbr.rel (%p2027) target = $region56
        $region55: #{tpu_custom_call.1} parent=39 // pred_region
          _
        $region56: #{tpu_custom_call.1} parent=39 // pred_fallthru
          _
      $region40: #{tpu_custom_call.1} parent=5 // pred_fallthru
        _
      %p2030 = scmp.le.s32.totalorder 2, %s15
      // Predicated region
      $region57: #{tpu_custom_call.1} parent=5 // pred_check
        %p2031 = pneg %p2030
      $region58: #{tpu_custom_call.1} parent=5 // pred_check_branch
        %2033 = sbr.rel (%p2031) target = $region60
      $region59: #{tpu_custom_call.1} parent=5 // pred_region
        %s2034 = ssub.s32 %s15, 2
        // Predicated region
        $region61: #{tpu_custom_call.1} parent=59 // pred_check
          %p2035 = pneg %p168
        $region62: #{tpu_custom_call.1} parent=59 // pred_check_branch
          %2037 = sbr.rel (%p2035) target = $region64
        $region63: #{tpu_custom_call.1} parent=59 // pred_region
          %p2038 = scmp.lt.s32.totalorder %s26, 1
          %s2039 = scalar_select %p2038, %s26, 1
          %p2040 = scmp.lt.s32.totalorder %s27, 0
          %s2041 = scalar_select %p2040, %s27, 0
          %s2042 = smul.addr %s2041, 25
          %s2043 = smul.addr %s2039, 25
          %s2044 = sadd.s32 %s2042, %s2043
          %s2045 = smul.addr %s2044, 8
          %s2046 = scalar_lea.vmem %s5, %s2045
        $region64: #{tpu_custom_call.1} parent=59 // pred_fallthru
          _
      $region60: #{tpu_custom_call.1} parent=5 // pred_fallthru
        _
    $region6: #{tpu_custom_call.1} parent=1 // loop_footer
      %s19 = sadd.s32 1, %s15
    $region7: #{tpu_custom_call.1} parent=1 // loop_footer_branch
      %14 = sbr.rel target = $region3
    $region8: #{tpu_custom_call.1} parent=1 // loop_exit
      _
    %2047 = vsyncpa [#allocation3], 1
    %s2048 = scalar_lea.sflag [#allocation3], 1
    %2049 = vsyncpa %s2048, 1
    %2050 = vsyncpa [#allocation5], 1

</llo_original>
